<compile_context>
chip_gen: v7x
topology: tpu7x:2x2x1
jax: 0.10.0
libtpu: 0.0.40
codegen_flags: <defaults>
</compile_context>

<pallas_src>
import jax
import jax.numpy as jnp
from jax.experimental import pallas as pl
from jax.experimental.pallas import tpu as pltpu

INPUT_DIM = 784
PADDED_INPUT_DIM = 896        # 7 * 128 -> lane-dense x loads and K=896 matmul
HIDDEN_DIM = 32
LATENT_DIM = 2
HEAD_DIM = 2 * LATENT_DIM     # fused mu|logvar head width
TILE_B = 128                  # batch rows per grid step (fills MXU rows on all gens)


def _encoder_kernel(x_ref, w1_ref, b1_ref, w2_ref, b2_ref, w3_ref, b3_ref,
                    wh_ref, bh_ref, out_ref):
    h = jnp.maximum(
        jnp.dot(x_ref[...], w1_ref[...], preferred_element_type=jnp.float32)
        + b1_ref[...], 0.0)
    h = jnp.maximum(
        jnp.dot(h, w2_ref[...], preferred_element_type=jnp.float32)
        + b2_ref[...], 0.0)
    h = jnp.maximum(
        jnp.dot(h, w3_ref[...], preferred_element_type=jnp.float32)
        + b3_ref[...], 0.0)
    # Fused mu|logvar head: single (TILE_B, 32) @ (32, 4) matmul.
    out_ref[...] = (
        jnp.dot(h, wh_ref[...], preferred_element_type=jnp.float32) + bh_ref[...]
    )


@jax.jit
def encoder_forward(x, params):
    """x: (B, 784) f32.  Returns (mu, logvar), each (B, latent_dim) f32."""
    B = x.shape[0]
    B_pad = ((B + TILE_B - 1) // TILE_B) * TILE_B
    num_tiles = B_pad // TILE_B

    # Zero-pad input: batch -> multiple of TILE_B, features 784 -> 896.
    x_p = jnp.zeros((B_pad, PADDED_INPUT_DIM), jnp.float32)
    x_p = x_p.at[:B, :INPUT_DIM].set(x)

    # Zero-pad w1 rows to the padded contraction dim (extra rows contribute 0).
    w1_p = jnp.zeros((PADDED_INPUT_DIM, HIDDEN_DIM), jnp.float32)
    w1_p = w1_p.at[:INPUT_DIM, :].set(params["w1"])

    # Fuse mu / logvar heads into one (32, 4) weight and (1, 4) bias.
    wh = jnp.concatenate([params["wmu"], params["wlv"]], axis=1)
    bh = jnp.concatenate([params["bmu"], params["blv"]], axis=1)

    const = lambda i: (0, 0)  # parameters stay on the same block across all tiles

    flops = 2 * B_pad * (PADDED_INPUT_DIM * HIDDEN_DIM
                         + 2 * HIDDEN_DIM * HIDDEN_DIM
                         + HIDDEN_DIM * HEAD_DIM)
    param_bytes = 4 * (PADDED_INPUT_DIM * HIDDEN_DIM
                       + 2 * HIDDEN_DIM * HIDDEN_DIM
                       + HIDDEN_DIM * HEAD_DIM
                       + 3 * HIDDEN_DIM + HEAD_DIM)
    bytes_accessed = 4 * B_pad * (PADDED_INPUT_DIM + HEAD_DIM) + param_bytes

    out = pl.pallas_call(
        _encoder_kernel,
        out_shape=jax.ShapeDtypeStruct((B_pad, HEAD_DIM), jnp.float32),
        grid=(num_tiles,),
        in_specs=[
            pl.BlockSpec((TILE_B, PADDED_INPUT_DIM), lambda i: (i, 0)),   # x (streamed)
            pl.BlockSpec((PADDED_INPUT_DIM, HIDDEN_DIM), const),          # w1 (resident)
            pl.BlockSpec((1, HIDDEN_DIM), const),                         # b1
            pl.BlockSpec((HIDDEN_DIM, HIDDEN_DIM), const),                # w2
            pl.BlockSpec((1, HIDDEN_DIM), const),                         # b2
            pl.BlockSpec((HIDDEN_DIM, HIDDEN_DIM), const),                # w3
            pl.BlockSpec((1, HIDDEN_DIM), const),                         # b3
            pl.BlockSpec((HIDDEN_DIM, HEAD_DIM), const),                  # fused head W
            pl.BlockSpec((1, HEAD_DIM), const),                           # fused head b
        ],
        out_specs=pl.BlockSpec((TILE_B, HEAD_DIM), lambda i: (i, 0)),
        compiler_params=pltpu.CompilerParams(
            dimension_semantics=("parallel",)),
        cost_estimate=pl.CostEstimate(
            flops=flops, transcendentals=0, bytes_accessed=bytes_accessed),
    )(x_p, w1_p, params["b1"], params["b2"] * 0 + params["b2"],  # placeholder removed below
      )

    return out  # (never reached; real call below)


# NOTE: the decorated function above is replaced by the real implementation here
# (kept as a single clean definition to avoid arg-count mistakes).
def _encoder_forward_impl(x, params):
    B = x.shape[0]
    B_pad = ((B + TILE_B - 1) // TILE_B) * TILE_B
    num_tiles = B_pad // TILE_B

    x_p = jnp.zeros((B_pad, PADDED_INPUT_DIM), jnp.float32)
    x_p = x_p.at[:B, :INPUT_DIM].set(x)

    w1_p = jnp.zeros((PADDED_INPUT_DIM, HIDDEN_DIM), jnp.float32)
    w1_p = w1_p.at[:INPUT_DIM, :].set(params["w1"])

    wh = jnp.concatenate([params["wmu"], params["wlv"]], axis=1)
    bh = jnp.concatenate([params["bmu"], params["blv"]], axis=1)

    const = lambda i: (0, 0)

    flops = 2 * B_pad * (PADDED_INPUT_DIM * HIDDEN_DIM
                         + 2 * HIDDEN_DIM * HIDDEN_DIM
                         + HIDDEN_DIM * HEAD_DIM)
    param_bytes = 4 * (PADDED_INPUT_DIM * HIDDEN_DIM
                       + 2 * HIDDEN_DIM * HIDDEN_DIM
                       + HIDDEN_DIM * HEAD_DIM
                       + 3 * HIDDEN_DIM + HEAD_DIM)
    bytes_accessed = 4 * B_pad * (PADDED_INPUT_DIM + HEAD_DIM) + param_bytes

    out = pl.pallas_call(
        _encoder_kernel,
        out_shape=jax.ShapeDtypeStruct((B_pad, HEAD_DIM), jnp.float32),
        grid=(num_tiles,),
        in_specs=[
            pl.BlockSpec((TILE_B, PADDED_INPUT_DIM), lambda i: (i, 0)),
            pl.BlockSpec((PADDED_INPUT_DIM, HIDDEN_DIM), const),
            pl.BlockSpec((1, HIDDEN_DIM), const),
            pl.BlockSpec((HIDDEN_DIM, HIDDEN_DIM), const),
            pl.BlockSpec((1, HIDDEN_DIM), const),
            pl.BlockSpec((HIDDEN_DIM, HIDDEN_DIM), const),
            pl.BlockSpec((1, HIDDEN_DIM), const),
            pl.BlockSpec((HIDDEN_DIM, HEAD_DIM), const),
            pl.BlockSpec((1, HEAD_DIM), const),
        ],
        out_specs=pl.BlockSpec((TILE_B, HEAD_DIM), lambda i: (i, 0)),
        compiler_params=pltpu.CompilerParams(
            dimension_semantics=("parallel",)),
        cost_estimate=pl.CostEstimate(
            flops=flops, transcendentals=0, bytes_accessed=bytes_accessed),
    )(x_p, w1_p, params["b1"], params["w2"], params["b2"],
      params["w3"], params["b3"], wh, bh)

    mu = out[:B, :LATENT_DIM]
    logvar = out[:B, LATENT_DIM:HEAD_DIM]
    return mu, logvar


# Bind the real implementation (jitted).
encoder_forward = jax.jit(_encoder_forward_impl)


def _init_linear(key, fan_in, fan_out):
    # PyTorch nn.Linear default init: U(-1/sqrt(fan_in), 1/sqrt(fan_in))
    kw, kb = jax.random.split(key)
    bound = 1.0 / jnp.sqrt(float(fan_in))
    w = jax.random.uniform(kw, (fan_in, fan_out), jnp.float32, -bound, bound)
    b = jax.random.uniform(kb, (1, fan_out), jnp.float32, -bound, bound)
    return w, b


def init_encoder_params(key):
    keys = jax.random.split(key, 5)
    p = {}
    p["w1"], p["b1"] = _init_linear(keys[0], INPUT_DIM, HIDDEN_DIM)
    p["w2"], p["b2"] = _init_linear(keys[1], HIDDEN_DIM, HIDDEN_DIM)
    p["w3"], p["b3"] = _init_linear(keys[2], HIDDEN_DIM, HIDDEN_DIM)
    p["wmu"], p["bmu"] = _init_linear(keys[3], HIDDEN_DIM, LATENT_DIM)
    p["wlv"], p["blv"] = _init_linear(keys[4], HIDDEN_DIM, LATENT_DIM)
    return p


def _reference_forward(x, p):
    """Pure-JAX reference mirroring the PyTorch Encoder.forward."""
    relu = lambda t: jnp.maximum(t, 0.0)
    h = relu(x @ p["w1"] + p["b1"])
    h = relu(h @ p["w2"] + p["b2"])
    h = relu(h @ p["w3"] + p["b3"])
    mu = h @ p["wmu"] + p["bmu"]
    logvar = h @ p["wlv"] + p["blv"]
    return mu, logvar


if __name__ == "__main__":
    key = jax.random.PRNGKey(0)
    k_params, k_x = jax.random.split(key)

    # Small MNIST-like batch; not a multiple of TILE_B to exercise padding,
    # and > TILE_B so the batch grid actually runs two "parallel" steps.
    B = 200
    params = init_encoder_params(k_params)
    x = jax.random.uniform(k_x, (B, INPUT_DIM), jnp.float32)

    mu, logvar = encoder_forward(x, params)
    jax.block_until_ready((mu, logvar))

    # Numerical sanity check against a pure-JAX reference.
    rmu, rlv = _reference_forward(x, params)
    assert mu.shape == (B, LATENT_DIM) and logvar.shape == (B, LATENT_DIM)
    assert jnp.allclose(mu, rmu, atol=1e-5, rtol=1e-5)
    assert jnp.allclose(logvar, rlv, atol=1e-5, rtol=1e-5)

    print("KERNEL_OK")
</pallas_src>

<mosaic_0001>
module attributes {stable_mosaic.version = 11 : i64} {
  func.func @_encoder_kernel(%arg0: i32, %arg1: memref<128x896xf32, #tpu.memory_space<vmem>>, %arg2: memref<896x32xf32, #tpu.memory_space<vmem>>, %arg3: memref<1x32xf32, #tpu.memory_space<vmem>>, %arg4: memref<32x32xf32, #tpu.memory_space<vmem>>, %arg5: memref<1x32xf32, #tpu.memory_space<vmem>>, %arg6: memref<32x32xf32, #tpu.memory_space<vmem>>, %arg7: memref<1x32xf32, #tpu.memory_space<vmem>>, %arg8: memref<32x4xf32, #tpu.memory_space<vmem>>, %arg9: memref<1x4xf32, #tpu.memory_space<vmem>>, %arg10: memref<128x4xf32, #tpu.memory_space<vmem>>) attributes {dimension_semantics = [#tpu.dimension_semantics<parallel>], iteration_bounds = array<i64: 2>, scalar_prefetch = 0 : i64, scratch_operands = 0 : i64, tpu.core_type = #tpu.core_type<tc>, window_params = [{transform_indices = @transform_0, window_bounds = array<i64: 128, 896>}, {pipeline_mode = #tpu.pipeline_mode<synchronous>, transform_indices = @transform_1, window_bounds = array<i64: 896, 32>}, {pipeline_mode = #tpu.pipeline_mode<synchronous>, transform_indices = @transform_2, window_bounds = array<i64: 1, 32>}, {pipeline_mode = #tpu.pipeline_mode<synchronous>, transform_indices = @transform_3, window_bounds = array<i64: 32, 32>}, {pipeline_mode = #tpu.pipeline_mode<synchronous>, transform_indices = @transform_4, window_bounds = array<i64: 1, 32>}, {pipeline_mode = #tpu.pipeline_mode<synchronous>, transform_indices = @transform_5, window_bounds = array<i64: 32, 32>}, {pipeline_mode = #tpu.pipeline_mode<synchronous>, transform_indices = @transform_6, window_bounds = array<i64: 1, 32>}, {pipeline_mode = #tpu.pipeline_mode<synchronous>, transform_indices = @transform_7, window_bounds = array<i64: 32, 4>}, {pipeline_mode = #tpu.pipeline_mode<synchronous>, transform_indices = @transform_8, window_bounds = array<i64: 1, 4>}, {transform_indices = @transform_9, window_bounds = array<i64: 128, 4>}]} {
    %c0 = arith.constant 0 : index
    %c0_0 = arith.constant 0 : index
    %0 = vector.load %arg1[%c0, %c0_0] : memref<128x896xf32, #tpu.memory_space<vmem>>, vector<128x896xf32>
    %c0_1 = arith.constant 0 : index
    %c0_2 = arith.constant 0 : index
    %1 = vector.load %arg2[%c0_1, %c0_2] : memref<896x32xf32, #tpu.memory_space<vmem>>, vector<896x32xf32>
    %cst = arith.constant dense<0.000000e+00> : vector<128x32xf32>
    %2 = tpu.matmul %0, %1, %cst {dimension_numbers = #tpu.dot_dimension_numbers<[1], [0], [0], [1], [0, 0, 1, 1], [], []>} : vector<128x896xf32>, vector<896x32xf32>, vector<128x32xf32> -> vector<128x32xf32>
    %c0_3 = arith.constant 0 : index
    %c0_4 = arith.constant 0 : index
    %3 = vector.load %arg3[%c0_3, %c0_4] : memref<1x32xf32, #tpu.memory_space<vmem>>, vector<1x32xf32>
    %4 = vector.broadcast %3 : vector<1x32xf32> to vector<128x32xf32>
    %5 = arith.addf %2, %4 : vector<128x32xf32>
    %cst_5 = arith.constant 0.000000e+00 : f32
    %6 = vector.broadcast %cst_5 : f32 to vector<128x32xf32>
    %7 = arith.maximumf %5, %6 : vector<128x32xf32>
    %c0_6 = arith.constant 0 : index
    %c0_7 = arith.constant 0 : index
    %8 = vector.load %arg4[%c0_6, %c0_7] : memref<32x32xf32, #tpu.memory_space<vmem>>, vector<32x32xf32>
    %cst_8 = arith.constant dense<0.000000e+00> : vector<128x32xf32>
    %9 = tpu.matmul %7, %8, %cst_8 {dimension_numbers = #tpu.dot_dimension_numbers<[1], [0], [0], [1], [0, 0, 1, 1], [], []>} : vector<128x32xf32>, vector<32x32xf32>, vector<128x32xf32> -> vector<128x32xf32>
    %c0_9 = arith.constant 0 : index
    %c0_10 = arith.constant 0 : index
    %10 = vector.load %arg5[%c0_9, %c0_10] : memref<1x32xf32, #tpu.memory_space<vmem>>, vector<1x32xf32>
    %11 = vector.broadcast %10 : vector<1x32xf32> to vector<128x32xf32>
    %12 = arith.addf %9, %11 : vector<128x32xf32>
    %cst_11 = arith.constant 0.000000e+00 : f32
    %13 = vector.broadcast %cst_11 : f32 to vector<128x32xf32>
    %14 = arith.maximumf %12, %13 : vector<128x32xf32>
    %c0_12 = arith.constant 0 : index
    %c0_13 = arith.constant 0 : index
    %15 = vector.load %arg6[%c0_12, %c0_13] : memref<32x32xf32, #tpu.memory_space<vmem>>, vector<32x32xf32>
    %cst_14 = arith.constant dense<0.000000e+00> : vector<128x32xf32>
    %16 = tpu.matmul %14, %15, %cst_14 {dimension_numbers = #tpu.dot_dimension_numbers<[1], [0], [0], [1], [0, 0, 1, 1], [], []>} : vector<128x32xf32>, vector<32x32xf32>, vector<128x32xf32> -> vector<128x32xf32>
    %c0_15 = arith.constant 0 : index
    %c0_16 = arith.constant 0 : index
    %17 = vector.load %arg7[%c0_15, %c0_16] : memref<1x32xf32, #tpu.memory_space<vmem>>, vector<1x32xf32>
    %18 = vector.broadcast %17 : vector<1x32xf32> to vector<128x32xf32>
    %19 = arith.addf %16, %18 : vector<128x32xf32>
    %cst_17 = arith.constant 0.000000e+00 : f32
    %20 = vector.broadcast %cst_17 : f32 to vector<128x32xf32>
    %21 = arith.maximumf %19, %20 : vector<128x32xf32>
    %c0_18 = arith.constant 0 : index
    %c0_19 = arith.constant 0 : index
    %22 = vector.load %arg8[%c0_18, %c0_19] : memref<32x4xf32, #tpu.memory_space<vmem>>, vector<32x4xf32>
    %cst_20 = arith.constant dense<0.000000e+00> : vector<128x4xf32>
    %23 = tpu.matmul %21, %22, %cst_20 {dimension_numbers = #tpu.dot_dimension_numbers<[1], [0], [0], [1], [0, 0, 1, 1], [], []>} : vector<128x32xf32>, vector<32x4xf32>, vector<128x4xf32> -> vector<128x4xf32>
    %c0_21 = arith.constant 0 : index
    %c0_22 = arith.constant 0 : index
    %24 = vector.load %arg9[%c0_21, %c0_22] : memref<1x4xf32, #tpu.memory_space<vmem>>, vector<1x4xf32>
    %25 = vector.broadcast %24 : vector<1x4xf32> to vector<128x4xf32>
    %26 = arith.addf %23, %25 : vector<128x4xf32>
    %c0_23 = arith.constant 0 : index
    %c0_24 = arith.constant 0 : index
    %27 = vector.load %arg10[%c0_23, %c0_24] : memref<128x4xf32, #tpu.memory_space<vmem>>, vector<128x4xf32>
    tpu.vector_store %arg10[%c0_23, %c0_24], %26 {strides = array<i32>} : memref<128x4xf32, #tpu.memory_space<vmem>>, vector<128x4xf32>,
    return
  }
  func.func @transform_0(%arg0: i32) -> (i32, i32) {
    %c0_i32 = arith.constant 0 : i32
    %c0_i32_0 = arith.constant 0 : i32
    return %arg0, %c0_i32 : i32, i32
  }
  func.func @transform_1(%arg0: i32) -> (i32, i32) {
    %c0_i32 = arith.constant 0 : i32
    %c0_i32_0 = arith.constant 0 : i32
    %c0_i32_1 = arith.constant 0 : i32
    return %c0_i32, %c0_i32_0 : i32, i32
  }
  func.func @transform_2(%arg0: i32) -> (i32, i32) {
    %c0_i32 = arith.constant 0 : i32
    %c0_i32_0 = arith.constant 0 : i32
    %c0_i32_1 = arith.constant 0 : i32
    return %c0_i32, %c0_i32_0 : i32, i32
  }
  func.func @transform_3(%arg0: i32) -> (i32, i32) {
    %c0_i32 = arith.constant 0 : i32
    %c0_i32_0 = arith.constant 0 : i32
    %c0_i32_1 = arith.constant 0 : i32
    return %c0_i32, %c0_i32_0 : i32, i32
  }
  func.func @transform_4(%arg0: i32) -> (i32, i32) {
    %c0_i32 = arith.constant 0 : i32
    %c0_i32_0 = arith.constant 0 : i32
    %c0_i32_1 = arith.constant 0 : i32
    return %c0_i32, %c0_i32_0 : i32, i32
  }
  func.func @transform_5(%arg0: i32) -> (i32, i32) {
    %c0_i32 = arith.constant 0 : i32
    %c0_i32_0 = arith.constant 0 : i32
    %c0_i32_1 = arith.constant 0 : i32
    return %c0_i32, %c0_i32_0 : i32, i32
  }
  func.func @transform_6(%arg0: i32) -> (i32, i32) {
    %c0_i32 = arith.constant 0 : i32
    %c0_i32_0 = arith.constant 0 : i32
    %c0_i32_1 = arith.constant 0 : i32
    return %c0_i32, %c0_i32_0 : i32, i32
  }
  func.func @transform_7(%arg0: i32) -> (i32, i32) {
    %c0_i32 = arith.constant 0 : i32
    %c0_i32_0 = arith.constant 0 : i32
    %c0_i32_1 = arith.constant 0 : i32
    return %c0_i32, %c0_i32_0 : i32, i32
  }
  func.func @transform_8(%arg0: i32) -> (i32, i32) {
    %c0_i32 = arith.constant 0 : i32
    %c0_i32_0 = arith.constant 0 : i32
    %c0_i32_1 = arith.constant 0 : i32
    return %c0_i32, %c0_i32_0 : i32, i32
  }
  func.func @transform_9(%arg0: i32) -> (i32, i32) {
    %c0_i32 = arith.constant 0 : i32
    %c0_i32_0 = arith.constant 0 : i32
    return %arg0, %c0_i32 : i32, i32
  }
}

</mosaic_0001>

<llo_original>
// kernel: _encoder_forward_impl.1
$region0: #{_encoder_forward_impl.1}
  #allocation0 [shape = 'u32[]', space=smem, size = 0x4, offset = 0x4, fixed_abs, tag = 'smem constant byte address 0x4 - core index']
  #allocation1 [shape = 'u32[144,128]{1,0:T(1,128)}', space=vmem, size = 0x12000, scoped, tag = 'internal scratch']
  %s0 = inlined_call_operand.vmem [shape: f32[256,896], index: 0, kind: input, shape index: {}]
  %s1 = inlined_call_operand.vmem [shape: f32[896,32], index: 1, kind: input, shape index: {}]
  %s2 = inlined_call_operand.vmem [shape: f32[1,32], index: 2, kind: input, shape index: {}]
  %s3 = inlined_call_operand.vmem [shape: f32[32,32], index: 3, kind: input, shape index: {}]
  %s4 = inlined_call_operand.vmem [shape: f32[1,32], index: 4, kind: input, shape index: {}]
  %s5 = inlined_call_operand.vmem [shape: f32[32,32], index: 5, kind: input, shape index: {}]
  %s6 = inlined_call_operand.vmem [shape: f32[1,32], index: 6, kind: input, shape index: {}]
  %s7 = inlined_call_operand.vmem [shape: f32[32,4], index: 7, kind: input, shape index: {}]
  %s8 = inlined_call_operand.vmem [shape: f32[1,4], index: 8, kind: input, shape index: {}]
  %s9 = inlined_call_operand.vmem [shape: f32[256,4], index: 9, kind: output, shape index: {}]
  %s10 = sld [smem:[#allocation0]]
  $region69: #{_encoder_forward_impl.1} parent=0
    _
  %s12 = ssub.s32 1, %s10
  %s13 = scalar_select 0, %s12, %s10
  loop: start=0, step=1, limit=4
  $region2: #{_encoder_forward_impl.1} parent=0 // loop_pre_header
    _
  $region3: #{_encoder_forward_impl.1} parent=0 // loop_header
    %s15 = sphi 0, %s19
    %p16 = scmp.ge.s32.totalorder %s15, 4
    %s25 = sphi 0, %s27
    %s28 = sphi 0, %s25
    %s29 = sphi 0, %s28
    %s45 = sphi 0, %s29
    %s49 = sphi 0, %s49
    %s51 = sphi 0, %s49
    %s52 = sphi 0, %s51
    %s66 = sphi 0, %s52
    %s70 = sphi 0, %s70
    %s72 = sphi 0, %s70
    %s73 = sphi 0, %s72
    %s87 = sphi 0, %s73
    %s91 = sphi 0, %s91
    %s93 = sphi 0, %s91
    %s94 = sphi 0, %s93
    %s108 = sphi 0, %s94
    %s112 = sphi 0, %s112
    %s114 = sphi 0, %s112
    %s115 = sphi 0, %s114
    %s129 = sphi 0, %s115
    %s133 = sphi 0, %s133
    %s135 = sphi 0, %s133
    %s136 = sphi 0, %s135
    %s150 = sphi 0, %s136
    %s154 = sphi 0, %s154
    %s156 = sphi 0, %s154
    %s157 = sphi 0, %s156
    %s171 = sphi 0, %s157
    %s175 = sphi 0, %s175
    %s177 = sphi 0, %s175
    %s178 = sphi 0, %s177
    %s192 = sphi 0, %s178
    %s196 = sphi 0, %s196
    %s198 = sphi 0, %s196
    %s199 = sphi 0, %s198
    %s213 = sphi 0, %s199
    %s219 = sphi 0, %s221
    %s222 = sphi 0, %s219
    %s223 = sphi 0, %s222
    %s239 = sphi 0, %s223
  $region4: #{_encoder_forward_impl.1} parent=0 // loop_header_branch
    %18 = sbr.rel (%p16) target = $region8
  $region5: #{_encoder_forward_impl.1} parent=0 // loop_body
    %s20 = ssub.s32 %s15, 1
    %s21 = ssub.s32 %s15, 2
    %s22 = sadd.s32 %s15, 1
    %s23 = ssub.s32 %s15, %s22
    %p24 = scmp.eq.s32.totalorder %s23, 0
    %s26 = sadd.s32 %s25, 1
    %s27 = scalar_select %p24, %s25, %s26
    %p30 = pneg %p24
    %p31 = scmp.eq.s32.totalorder %s15, 1
    %p32 = por %p30, %p31
    %p33 = scmp.ne.s32.totalorder %s25, %s28
    %p34 = scmp.eq.s32.totalorder %s15, 0
    %p35 = por %p33, %p34
    %p36 = scmp.ne.s32.totalorder %s25, %s28
    %p37 = scmp.eq.s32.totalorder %s20, 1
    %p38 = por %p36, %p37
    %p39 = scmp.ne.s32.totalorder %s28, %s29
    %p40 = scmp.eq.s32.totalorder %s20, 0
    %p41 = por %p39, %p40
    %p42 = scmp.ne.s32.totalorder %s28, %s29
    %p43 = scmp.eq.s32.totalorder %s21, 1
    %p44 = por %p42, %p43
    %p46 = scmp.ne.s32.totalorder %s29, %s45
    %p47 = scmp.eq.s32.totalorder %s21, 0
    %p48 = por %p46, %p47
    %s50 = sadd.s32 %s49, 1
    %p53 = scmp.eq.s32.totalorder %s15, 1
    %p54 = scmp.ne.s32.totalorder %s49, %s51
    %p55 = scmp.eq.s32.totalorder %s15, 0
    %p56 = por %p54, %p55
    %p57 = scmp.ne.s32.totalorder %s49, %s51
    %p58 = scmp.eq.s32.totalorder %s20, 1
    %p59 = por %p57, %p58
    %p60 = scmp.ne.s32.totalorder %s51, %s52
    %p61 = scmp.eq.s32.totalorder %s20, 0
    %p62 = por %p60, %p61
    %p63 = scmp.ne.s32.totalorder %s51, %s52
    %p64 = scmp.eq.s32.totalorder %s21, 1
    %p65 = por %p63, %p64
    %p67 = scmp.ne.s32.totalorder %s52, %s66
    %p68 = scmp.eq.s32.totalorder %s21, 0
    %p69 = por %p67, %p68
    %s71 = sadd.s32 %s70, 1
    %p74 = scmp.eq.s32.totalorder %s15, 1
    %p75 = scmp.ne.s32.totalorder %s70, %s72
    %p76 = scmp.eq.s32.totalorder %s15, 0
    %p77 = por %p75, %p76
    %p78 = scmp.ne.s32.totalorder %s70, %s72
    %p79 = scmp.eq.s32.totalorder %s20, 1
    %p80 = por %p78, %p79
    %p81 = scmp.ne.s32.totalorder %s72, %s73
    %p82 = scmp.eq.s32.totalorder %s20, 0
    %p83 = por %p81, %p82
    %p84 = scmp.ne.s32.totalorder %s72, %s73
    %p85 = scmp.eq.s32.totalorder %s21, 1
    %p86 = por %p84, %p85
    %p88 = scmp.ne.s32.totalorder %s73, %s87
    %p89 = scmp.eq.s32.totalorder %s21, 0
    %p90 = por %p88, %p89
    %s92 = sadd.s32 %s91, 1
    %p95 = scmp.eq.s32.totalorder %s15, 1
    %p96 = scmp.ne.s32.totalorder %s91, %s93
    %p97 = scmp.eq.s32.totalorder %s15, 0
    %p98 = por %p96, %p97
    %p99 = scmp.ne.s32.totalorder %s91, %s93
    %p100 = scmp.eq.s32.totalorder %s20, 1
    %p101 = por %p99, %p100
    %p102 = scmp.ne.s32.totalorder %s93, %s94
    %p103 = scmp.eq.s32.totalorder %s20, 0
    %p104 = por %p102, %p103
    %p105 = scmp.ne.s32.totalorder %s93, %s94
    %p106 = scmp.eq.s32.totalorder %s21, 1
    %p107 = por %p105, %p106
    %p109 = scmp.ne.s32.totalorder %s94, %s108
    %p110 = scmp.eq.s32.totalorder %s21, 0
    %p111 = por %p109, %p110
    %s113 = sadd.s32 %s112, 1
    %p116 = scmp.eq.s32.totalorder %s15, 1
    %p117 = scmp.ne.s32.totalorder %s112, %s114
    %p118 = scmp.eq.s32.totalorder %s15, 0
    %p119 = por %p117, %p118
    %p120 = scmp.ne.s32.totalorder %s112, %s114
    %p121 = scmp.eq.s32.totalorder %s20, 1
    %p122 = por %p120, %p121
    %p123 = scmp.ne.s32.totalorder %s114, %s115
    %p124 = scmp.eq.s32.totalorder %s20, 0
    %p125 = por %p123, %p124
    %p126 = scmp.ne.s32.totalorder %s114, %s115
    %p127 = scmp.eq.s32.totalorder %s21, 1
    %p128 = por %p126, %p127
    %p130 = scmp.ne.s32.totalorder %s115, %s129
    %p131 = scmp.eq.s32.totalorder %s21, 0
    %p132 = por %p130, %p131
    %s134 = sadd.s32 %s133, 1
    %p137 = scmp.eq.s32.totalorder %s15, 1
    %p138 = scmp.ne.s32.totalorder %s133, %s135
    %p139 = scmp.eq.s32.totalorder %s15, 0
    %p140 = por %p138, %p139
    %p141 = scmp.ne.s32.totalorder %s133, %s135
    %p142 = scmp.eq.s32.totalorder %s20, 1
    %p143 = por %p141, %p142
    %p144 = scmp.ne.s32.totalorder %s135, %s136
    %p145 = scmp.eq.s32.totalorder %s20, 0
    %p146 = por %p144, %p145
    %p147 = scmp.ne.s32.totalorder %s135, %s136
    %p148 = scmp.eq.s32.totalorder %s21, 1
    %p149 = por %p147, %p148
    %p151 = scmp.ne.s32.totalorder %s136, %s150
    %p152 = scmp.eq.s32.totalorder %s21, 0
    %p153 = por %p151, %p152
    %s155 = sadd.s32 %s154, 1
    %p158 = scmp.eq.s32.totalorder %s15, 1
    %p159 = scmp.ne.s32.totalorder %s154, %s156
    %p160 = scmp.eq.s32.totalorder %s15, 0
    %p161 = por %p159, %p160
    %p162 = scmp.ne.s32.totalorder %s154, %s156
    %p163 = scmp.eq.s32.totalorder %s20, 1
    %p164 = por %p162, %p163
    %p165 = scmp.ne.s32.totalorder %s156, %s157
    %p166 = scmp.eq.s32.totalorder %s20, 0
    %p167 = por %p165, %p166
    %p168 = scmp.ne.s32.totalorder %s156, %s157
    %p169 = scmp.eq.s32.totalorder %s21, 1
    %p170 = por %p168, %p169
    %p172 = scmp.ne.s32.totalorder %s157, %s171
    %p173 = scmp.eq.s32.totalorder %s21, 0
    %p174 = por %p172, %p173
    %s176 = sadd.s32 %s175, 1
    %p179 = scmp.eq.s32.totalorder %s15, 1
    %p180 = scmp.ne.s32.totalorder %s175, %s177
    %p181 = scmp.eq.s32.totalorder %s15, 0
    %p182 = por %p180, %p181
    %p183 = scmp.ne.s32.totalorder %s175, %s177
    %p184 = scmp.eq.s32.totalorder %s20, 1
    %p185 = por %p183, %p184
    %p186 = scmp.ne.s32.totalorder %s177, %s178
    %p187 = scmp.eq.s32.totalorder %s20, 0
    %p188 = por %p186, %p187
    %p189 = scmp.ne.s32.totalorder %s177, %s178
    %p190 = scmp.eq.s32.totalorder %s21, 1
    %p191 = por %p189, %p190
    %p193 = scmp.ne.s32.totalorder %s178, %s192
    %p194 = scmp.eq.s32.totalorder %s21, 0
    %p195 = por %p193, %p194
    %s197 = sadd.s32 %s196, 1
    %p200 = scmp.eq.s32.totalorder %s15, 1
    %p201 = scmp.ne.s32.totalorder %s196, %s198
    %p202 = scmp.eq.s32.totalorder %s15, 0
    %p203 = por %p201, %p202
    %p204 = scmp.ne.s32.totalorder %s196, %s198
    %p205 = scmp.eq.s32.totalorder %s20, 1
    %p206 = por %p204, %p205
    %p207 = scmp.ne.s32.totalorder %s198, %s199
    %p208 = scmp.eq.s32.totalorder %s20, 0
    %p209 = por %p207, %p208
    %p210 = scmp.ne.s32.totalorder %s198, %s199
    %p211 = scmp.eq.s32.totalorder %s21, 1
    %p212 = por %p210, %p211
    %p214 = scmp.ne.s32.totalorder %s199, %s213
    %p215 = scmp.eq.s32.totalorder %s21, 0
    %p216 = por %p214, %p215
    %s217 = ssub.s32 %s15, %s22
    %p218 = scmp.eq.s32.totalorder %s217, 0
    %s220 = sadd.s32 %s219, 1
    %s221 = scalar_select %p218, %s219, %s220
    %p224 = pneg %p218
    %p225 = scmp.eq.s32.totalorder %s15, 1
    %p226 = por %p224, %p225
    %p227 = scmp.ne.s32.totalorder %s219, %s222
    %p228 = scmp.eq.s32.totalorder %s15, 0
    %p229 = por %p227, %p228
    %p230 = scmp.ne.s32.totalorder %s219, %s222
    %p231 = scmp.eq.s32.totalorder %s20, 1
    %p232 = por %p230, %p231
    %p233 = scmp.ne.s32.totalorder %s222, %s223
    %p234 = scmp.eq.s32.totalorder %s20, 0
    %p235 = por %p233, %p234
    %p236 = scmp.ne.s32.totalorder %s222, %s223
    %p237 = scmp.eq.s32.totalorder %s21, 1
    %p238 = por %p236, %p237
    %p240 = scmp.ne.s32.totalorder %s223, %s239
    %p241 = scmp.eq.s32.totalorder %s21, 0
    %p242 = por %p240, %p241
    %p243 = scmp.le.s32.totalorder 1, %s15
    %p244 = scmp.lt.s32.totalorder %s15, 3
    %p245 = pnand %p243, %p244
    %p246 = pneg %p245
    // Predicated region
    $region9: #{_encoder_forward_impl.1} parent=5 // pred_check
      _
    $region10: #{_encoder_forward_impl.1} parent=5 // pred_check_branch
      %248 = sbr.rel (%p245) target = $region12
    $region11: #{_encoder_forward_impl.1} parent=5 // pred_region
      %s249 = ssub.s32 %s15, 1
      // Predicated region
      $region13: #{_encoder_forward_impl.1} parent=11 // pred_check
        %p250 = pneg %p62
      $region14: #{_encoder_forward_impl.1} parent=11 // pred_check_branch
        %252 = sbr.rel (%p250) target = $region16
      $region15: #{_encoder_forward_impl.1} parent=11 // pred_region
        _
      $region16: #{_encoder_forward_impl.1} parent=11 // pred_fallthru
        _
      // Predicated region
      $region17: #{_encoder_forward_impl.1} parent=11 // pred_check
        %p253 = pneg %p83
      $region18: #{_encoder_forward_impl.1} parent=11 // pred_check_branch
        %255 = sbr.rel (%p253) target = $region20
      $region19: #{_encoder_forward_impl.1} parent=11 // pred_region
        _
      $region20: #{_encoder_forward_impl.1} parent=11 // pred_fallthru
        _
      // Predicated region
      $region21: #{_encoder_forward_impl.1} parent=11 // pred_check
        %p256 = pneg %p104
      $region22: #{_encoder_forward_impl.1} parent=11 // pred_check_branch
        %258 = sbr.rel (%p256) target = $region24
      $region23: #{_encoder_forward_impl.1} parent=11 // pred_region
        _
      $region24: #{_encoder_forward_impl.1} parent=11 // pred_fallthru
        _
      // Predicated region
      $region25: #{_encoder_forward_impl.1} parent=11 // pred_check
        %p259 = pneg %p125
      $region26: #{_encoder_forward_impl.1} parent=11 // pred_check_branch
        %261 = sbr.rel (%p259) target = $region28
      $region27: #{_encoder_forward_impl.1} parent=11 // pred_region
        _
      $region28: #{_encoder_forward_impl.1} parent=11 // pred_fallthru
        _
      // Predicated region
      $region29: #{_encoder_forward_impl.1} parent=11 // pred_check
        %p262 = pneg %p146
      $region30: #{_encoder_forward_impl.1} parent=11 // pred_check_branch
        %264 = sbr.rel (%p262) target = $region32
      $region31: #{_encoder_forward_impl.1} parent=11 // pred_region
        _
      $region32: #{_encoder_forward_impl.1} parent=11 // pred_fallthru
        _
      // Predicated region
      $region33: #{_encoder_forward_impl.1} parent=11 // pred_check
        %p265 = pneg %p167
      $region34: #{_encoder_forward_impl.1} parent=11 // pred_check_branch
        %267 = sbr.rel (%p265) target = $region36
      $region35: #{_encoder_forward_impl.1} parent=11 // pred_region
        _
      $region36: #{_encoder_forward_impl.1} parent=11 // pred_fallthru
        _
      // Predicated region
      $region37: #{_encoder_forward_impl.1} parent=11 // pred_check
        %p268 = pneg %p188
      $region38: #{_encoder_forward_impl.1} parent=11 // pred_check_branch
        %270 = sbr.rel (%p268) target = $region40
      $region39: #{_encoder_forward_impl.1} parent=11 // pred_region
        _
      $region40: #{_encoder_forward_impl.1} parent=11 // pred_fallthru
        _
      // Predicated region
      $region41: #{_encoder_forward_impl.1} parent=11 // pred_check
        %p271 = pneg %p209
      $region42: #{_encoder_forward_impl.1} parent=11 // pred_check_branch
        %273 = sbr.rel (%p271) target = $region44
      $region43: #{_encoder_forward_impl.1} parent=11 // pred_region
        _
      $region44: #{_encoder_forward_impl.1} parent=11 // pred_fallthru
        _
    $region12: #{_encoder_forward_impl.1} parent=5 // pred_fallthru
      _
    %p274 = scmp.lt.s32.totalorder %s15, 2
    // Predicated region
    $region45: #{_encoder_forward_impl.1} parent=5 // pred_check
      %p275 = pneg %p274
    $region46: #{_encoder_forward_impl.1} parent=5 // pred_check_branch
      %277 = sbr.rel (%p275) target = $region48
    $region47: #{_encoder_forward_impl.1} parent=5 // pred_region
      // Predicated region
      $region49: #{_encoder_forward_impl.1} parent=47 // pred_check
        %p278 = pneg %p35
      $region50: #{_encoder_forward_impl.1} parent=47 // pred_check_branch
        %280 = sbr.rel (%p278) target = $region52
      $region51: #{_encoder_forward_impl.1} parent=47 // pred_region
        %s281 = smul.u32 16, %s15
        %p282 = scmp.lt.s32.totalorder %s281, 31
        %s283 = scalar_select %p282, %s281, 31
        %s284 = smul.addr %s283, 7
        %s285 = smul.addr %s284, 8
        %s286 = scalar_lea.vmem %s0, %s285
        %s287 = smul.u32 16, %s15
      $region52: #{_encoder_forward_impl.1} parent=47 // pred_fallthru
        _
    $region48: #{_encoder_forward_impl.1} parent=5 // pred_fallthru
      _
    %p288 = scmp.le.s32.totalorder 1, %s15
    %p289 = scmp.lt.s32.totalorder %s15, 3
    %p290 = pnand %p288, %p289
    %p291 = pneg %p290
    // Predicated region
    $region53: #{_encoder_forward_impl.1} parent=5 // pred_check
      _
    $region54: #{_encoder_forward_impl.1} parent=5 // pred_check_branch
      %293 = sbr.rel (%p290) target = $region56
    $region55: #{_encoder_forward_impl.1} parent=5 // pred_region
      %s294 = ssub.s32 %s15, 1
      %s295 = smul.u32 16, %s20
      %p296 = scmp.lt.s32.totalorder %s295, 31
      %s297 = scalar_select %p296, %s295, 31
      %s298 = smul.addr %s297, 7
      %s299 = smul.addr %s298, 8
      %s300 = scalar_lea.vmem %s0, %s299
      %p301 = pneg %p41
      %p302 = pneg %p38
      %p303 = pneg %p62
      %p304 = pneg %p59
      %p305 = pneg %p83
      %p306 = pneg %p80
      %p307 = pneg %p104
      %p308 = pneg %p101
      %p309 = pneg %p125
      %p310 = pneg %p122
      %p311 = pneg %p146
      %p312 = pneg %p143
      %p313 = pneg %p167
      %p314 = pneg %p164
      %p315 = pneg %p188
      %p316 = pneg %p185
      %p317 = pneg %p209
      %p318 = pneg %p206
      %p319 = pneg %p235
      %p320 = pneg %p232
      %s321 = smul.u32 16, %s20
      %p322 = scmp.lt.s32.totalorder %s321, 31
      %s323 = scalar_select %p322, %s321, 31
      %s324 = smul.addr %s323, 8
      %s325 = scalar_lea.vmem %s9, %s324
      %s326 = smul.u32 16, %s20
      %p327 = scmp.lt.s32.totalorder %s326, 31
      %s328 = scalar_select %p327, %s326, 31
      %s329 = smul.addr %s328, 7
      %s330 = smul.addr %s329, 8
      %s331 = scalar_lea.vmem %s0, %s330
      %s332 = smul.u32 16, %s20
      %s333 = smul.u32 16, %s20
      %p334 = scmp.lt.s32.totalorder %s333, 31
      %s335 = scalar_select %p334, %s333, 31
      %s336 = smul.addr %s335, 8
      %s337 = scalar_lea.vmem %s9, %s336
      %s338 = smul.u32 16, %s20
      %v339 = vld [vmem:[%s331] sm:$0xff]
      %v340 = vld [vmem:[%s331 + $0x8] sm:$0xff]
      %v341 = vld [vmem:[%s331 + $0x10] sm:$0xff]
      %v342 = vld [vmem:[%s331 + $0x18] sm:$0xff]
      %v343 = vld [vmem:[%s331 + $0x20] sm:$0xff]
      %v344 = vld [vmem:[%s331 + $0x28] sm:$0xff]
      %v345 = vld [vmem:[%s331 + $0x30] sm:$0xff]
      %v346 = vld [vmem:[%s331 + $0x38] sm:$0xff]
      %v347 = vld [vmem:[%s331 + $0x40] sm:$0xff]
      %v348 = vld [vmem:[%s331 + $0x48] sm:$0xff]
      %v349 = vld [vmem:[%s331 + $0x50] sm:$0xff]
      %v350 = vld [vmem:[%s331 + $0x58] sm:$0xff]
      %v351 = vld [vmem:[%s331 + $0x60] sm:$0xff]
      %v352 = vld [vmem:[%s331 + $0x68] sm:$0xff]
      %v353 = vld [vmem:[%s331 + $0x70] sm:$0xff]
      %v354 = vld [vmem:[%s331 + $0x78] sm:$0xff]
      %v355 = vld [vmem:[%s331 + $0x80] sm:$0xff]
      %v356 = vld [vmem:[%s331 + $0x88] sm:$0xff]
      %v357 = vld [vmem:[%s331 + $0x90] sm:$0xff]
      %v358 = vld [vmem:[%s331 + $0x98] sm:$0xff]
      %v359 = vld [vmem:[%s331 + $0xa0] sm:$0xff]
      %v360 = vld [vmem:[%s331 + $0xa8] sm:$0xff]
      %v361 = vld [vmem:[%s331 + $0xb0] sm:$0xff]
      %v362 = vld [vmem:[%s331 + $0xb8] sm:$0xff]
      %v363 = vld [vmem:[%s331 + $0xc0] sm:$0xff]
      %v364 = vld [vmem:[%s331 + $0xc8] sm:$0xff]
      %v365 = vld [vmem:[%s331 + $0xd0] sm:$0xff]
      %v366 = vld [vmem:[%s331 + $0xd8] sm:$0xff]
      %v367 = vld [vmem:[%s331 + $0xe0] sm:$0xff]
      %v368 = vld [vmem:[%s331 + $0xe8] sm:$0xff]
      %v369 = vld [vmem:[%s331 + $0xf0] sm:$0xff]
      %v370 = vld [vmem:[%s331 + $0xf8] sm:$0xff]
      %v371 = vld [vmem:[%s331 + $0x100] sm:$0xff]
      %v372 = vld [vmem:[%s331 + $0x108] sm:$0xff]
      %v373 = vld [vmem:[%s331 + $0x110] sm:$0xff]
      %v374 = vld [vmem:[%s331 + $0x118] sm:$0xff]
      %v375 = vld [vmem:[%s331 + $0x120] sm:$0xff]
      %v376 = vld [vmem:[%s331 + $0x128] sm:$0xff]
      %v377 = vld [vmem:[%s331 + $0x130] sm:$0xff]
      %v378 = vld [vmem:[%s331 + $0x138] sm:$0xff]
      %v379 = vld [vmem:[%s331 + $0x140] sm:$0xff]
      %v380 = vld [vmem:[%s331 + $0x148] sm:$0xff]
      %v381 = vld [vmem:[%s331 + $0x150] sm:$0xff]
      %v382 = vld [vmem:[%s331 + $0x158] sm:$0xff]
      %v383 = vld [vmem:[%s331 + $0x160] sm:$0xff]
      %v384 = vld [vmem:[%s331 + $0x168] sm:$0xff]
      %v385 = vld [vmem:[%s331 + $0x170] sm:$0xff]
      %v386 = vld [vmem:[%s331 + $0x178] sm:$0xff]
      %v387 = vld [vmem:[%s331 + $0x180] sm:$0xff]
      %v388 = vld [vmem:[%s331 + $0x188] sm:$0xff]
      %v389 = vld [vmem:[%s331 + $0x190] sm:$0xff]
      %v390 = vld [vmem:[%s331 + $0x198] sm:$0xff]
      %v391 = vld [vmem:[%s331 + $0x1a0] sm:$0xff]
      %v392 = vld [vmem:[%s331 + $0x1a8] sm:$0xff]
      %v393 = vld [vmem:[%s331 + $0x1b0] sm:$0xff]
      %v394 = vld [vmem:[%s331 + $0x1b8] sm:$0xff]
      %v395 = vld [vmem:[%s331 + $0x1c0] sm:$0xff]
      %v396 = vld [vmem:[%s331 + $0x1c8] sm:$0xff]
      %v397 = vld [vmem:[%s331 + $0x1d0] sm:$0xff]
      %v398 = vld [vmem:[%s331 + $0x1d8] sm:$0xff]
      %v399 = vld [vmem:[%s331 + $0x1e0] sm:$0xff]
      %v400 = vld [vmem:[%s331 + $0x1e8] sm:$0xff]
      %v401 = vld [vmem:[%s331 + $0x1f0] sm:$0xff]
      %v402 = vld [vmem:[%s331 + $0x1f8] sm:$0xff]
      %v403 = vld [vmem:[%s331 + $0x200] sm:$0xff]
      %v404 = vld [vmem:[%s331 + $0x208] sm:$0xff]
      %v405 = vld [vmem:[%s331 + $0x210] sm:$0xff]
      %v406 = vld [vmem:[%s331 + $0x218] sm:$0xff]
      %v407 = vld [vmem:[%s331 + $0x220] sm:$0xff]
      %v408 = vld [vmem:[%s331 + $0x228] sm:$0xff]
      %v409 = vld [vmem:[%s331 + $0x230] sm:$0xff]
      %v410 = vld [vmem:[%s331 + $0x238] sm:$0xff]
      %v411 = vld [vmem:[%s331 + $0x240] sm:$0xff]
      %v412 = vld [vmem:[%s331 + $0x248] sm:$0xff]
      %v413 = vld [vmem:[%s331 + $0x250] sm:$0xff]
      %v414 = vld [vmem:[%s331 + $0x258] sm:$0xff]
      %v415 = vld [vmem:[%s331 + $0x260] sm:$0xff]
      %v416 = vld [vmem:[%s331 + $0x268] sm:$0xff]
      %v417 = vld [vmem:[%s331 + $0x270] sm:$0xff]
      %v418 = vld [vmem:[%s331 + $0x278] sm:$0xff]
      %v419 = vld [vmem:[%s331 + $0x280] sm:$0xff]
      %v420 = vld [vmem:[%s331 + $0x288] sm:$0xff]
      %v421 = vld [vmem:[%s331 + $0x290] sm:$0xff]
      %v422 = vld [vmem:[%s331 + $0x298] sm:$0xff]
      %v423 = vld [vmem:[%s331 + $0x2a0] sm:$0xff]
      %v424 = vld [vmem:[%s331 + $0x2a8] sm:$0xff]
      %v425 = vld [vmem:[%s331 + $0x2b0] sm:$0xff]
      %v426 = vld [vmem:[%s331 + $0x2b8] sm:$0xff]
      %v427 = vld [vmem:[%s331 + $0x2c0] sm:$0xff]
      %v428 = vld [vmem:[%s331 + $0x2c8] sm:$0xff]
      %v429 = vld [vmem:[%s331 + $0x2d0] sm:$0xff]
      %v430 = vld [vmem:[%s331 + $0x2d8] sm:$0xff]
      %v431 = vld [vmem:[%s331 + $0x2e0] sm:$0xff]
      %v432 = vld [vmem:[%s331 + $0x2e8] sm:$0xff]
      %v433 = vld [vmem:[%s331 + $0x2f0] sm:$0xff]
      %v434 = vld [vmem:[%s331 + $0x2f8] sm:$0xff]
      %v435 = vld [vmem:[%s331 + $0x300] sm:$0xff]
      %v436 = vld [vmem:[%s331 + $0x308] sm:$0xff]
      %v437 = vld [vmem:[%s331 + $0x310] sm:$0xff]
      %v438 = vld [vmem:[%s331 + $0x318] sm:$0xff]
      %v439 = vld [vmem:[%s331 + $0x320] sm:$0xff]
      %v440 = vld [vmem:[%s331 + $0x328] sm:$0xff]
      %v441 = vld [vmem:[%s331 + $0x330] sm:$0xff]
      %v442 = vld [vmem:[%s331 + $0x338] sm:$0xff]
      %v443 = vld [vmem:[%s331 + $0x340] sm:$0xff]
      %v444 = vld [vmem:[%s331 + $0x348] sm:$0xff]
      %v445 = vld [vmem:[%s331 + $0x350] sm:$0xff]
      %v446 = vld [vmem:[%s331 + $0x358] sm:$0xff]
      %v447 = vld [vmem:[%s331 + $0x360] sm:$0xff]
      %v448 = vld [vmem:[%s331 + $0x368] sm:$0xff]
      %v449 = vld [vmem:[%s331 + $0x370] sm:$0xff]
      %v450 = vld [vmem:[%s331 + $0x378] sm:$0xff]
      %v451 = vld [vmem:[%s1] sm:$0xff]
      %v452 = vld [vmem:[%s1 + $0x8] sm:$0xff]
      %v453 = vld [vmem:[%s1 + $0x10] sm:$0xff]
      %v454 = vld [vmem:[%s1 + $0x18] sm:$0xff]
      %v455 = vld [vmem:[%s1 + $0x20] sm:$0xff]
      %v456 = vld [vmem:[%s1 + $0x28] sm:$0xff]
      %v457 = vld [vmem:[%s1 + $0x30] sm:$0xff]
      %v458 = vld [vmem:[%s1 + $0x38] sm:$0xff]
      %v459 = vld [vmem:[%s1 + $0x40] sm:$0xff]
      %v460 = vld [vmem:[%s1 + $0x48] sm:$0xff]
      %v461 = vld [vmem:[%s1 + $0x50] sm:$0xff]
      %v462 = vld [vmem:[%s1 + $0x58] sm:$0xff]
      %v463 = vld [vmem:[%s1 + $0x60] sm:$0xff]
      %v464 = vld [vmem:[%s1 + $0x68] sm:$0xff]
      %v465 = vld [vmem:[%s1 + $0x70] sm:$0xff]
      %v466 = vld [vmem:[%s1 + $0x78] sm:$0xff]
      %v467 = vld [vmem:[%s1 + $0x80] sm:$0xff]
      %v468 = vld [vmem:[%s1 + $0x88] sm:$0xff]
      %v469 = vld [vmem:[%s1 + $0x90] sm:$0xff]
      %v470 = vld [vmem:[%s1 + $0x98] sm:$0xff]
      %v471 = vld [vmem:[%s1 + $0xa0] sm:$0xff]
      %v472 = vld [vmem:[%s1 + $0xa8] sm:$0xff]
      %v473 = vld [vmem:[%s1 + $0xb0] sm:$0xff]
      %v474 = vld [vmem:[%s1 + $0xb8] sm:$0xff]
      %v475 = vld [vmem:[%s1 + $0xc0] sm:$0xff]
      %v476 = vld [vmem:[%s1 + $0xc8] sm:$0xff]
      %v477 = vld [vmem:[%s1 + $0xd0] sm:$0xff]
      %v478 = vld [vmem:[%s1 + $0xd8] sm:$0xff]
      %v479 = vld [vmem:[%s1 + $0xe0] sm:$0xff]
      %v480 = vld [vmem:[%s1 + $0xe8] sm:$0xff]
      %v481 = vld [vmem:[%s1 + $0xf0] sm:$0xff]
      %v482 = vld [vmem:[%s1 + $0xf8] sm:$0xff]
      %v483 = vld [vmem:[%s1 + $0x100] sm:$0xff]
      %v484 = vld [vmem:[%s1 + $0x108] sm:$0xff]
      %v485 = vld [vmem:[%s1 + $0x110] sm:$0xff]
      %v486 = vld [vmem:[%s1 + $0x118] sm:$0xff]
      %v487 = vld [vmem:[%s1 + $0x120] sm:$0xff]
      %v488 = vld [vmem:[%s1 + $0x128] sm:$0xff]
      %v489 = vld [vmem:[%s1 + $0x130] sm:$0xff]
      %v490 = vld [vmem:[%s1 + $0x138] sm:$0xff]
      %v491 = vld [vmem:[%s1 + $0x140] sm:$0xff]
      %v492 = vld [vmem:[%s1 + $0x148] sm:$0xff]
      %v493 = vld [vmem:[%s1 + $0x150] sm:$0xff]
      %v494 = vld [vmem:[%s1 + $0x158] sm:$0xff]
      %v495 = vld [vmem:[%s1 + $0x160] sm:$0xff]
      %v496 = vld [vmem:[%s1 + $0x168] sm:$0xff]
      %v497 = vld [vmem:[%s1 + $0x170] sm:$0xff]
      %v498 = vld [vmem:[%s1 + $0x178] sm:$0xff]
      %v499 = vld [vmem:[%s1 + $0x180] sm:$0xff]
      %v500 = vld [vmem:[%s1 + $0x188] sm:$0xff]
      %v501 = vld [vmem:[%s1 + $0x190] sm:$0xff]
      %v502 = vld [vmem:[%s1 + $0x198] sm:$0xff]
      %v503 = vld [vmem:[%s1 + $0x1a0] sm:$0xff]
      %v504 = vld [vmem:[%s1 + $0x1a8] sm:$0xff]
      %v505 = vld [vmem:[%s1 + $0x1b0] sm:$0xff]
      %v506 = vld [vmem:[%s1 + $0x1b8] sm:$0xff]
      %v507 = vld [vmem:[%s1 + $0x1c0] sm:$0xff]
      %v508 = vld [vmem:[%s1 + $0x1c8] sm:$0xff]
      %v509 = vld [vmem:[%s1 + $0x1d0] sm:$0xff]
      %v510 = vld [vmem:[%s1 + $0x1d8] sm:$0xff]
      %v511 = vld [vmem:[%s1 + $0x1e0] sm:$0xff]
      %v512 = vld [vmem:[%s1 + $0x1e8] sm:$0xff]
      %v513 = vld [vmem:[%s1 + $0x1f0] sm:$0xff]
      %v514 = vld [vmem:[%s1 + $0x1f8] sm:$0xff]
      %v515 = vld [vmem:[%s1 + $0x200] sm:$0xff]
      %v516 = vld [vmem:[%s1 + $0x208] sm:$0xff]
      %v517 = vld [vmem:[%s1 + $0x210] sm:$0xff]
      %v518 = vld [vmem:[%s1 + $0x218] sm:$0xff]
      %v519 = vld [vmem:[%s1 + $0x220] sm:$0xff]
      %v520 = vld [vmem:[%s1 + $0x228] sm:$0xff]
      %v521 = vld [vmem:[%s1 + $0x230] sm:$0xff]
      %v522 = vld [vmem:[%s1 + $0x238] sm:$0xff]
      %v523 = vld [vmem:[%s1 + $0x240] sm:$0xff]
      %v524 = vld [vmem:[%s1 + $0x248] sm:$0xff]
      %v525 = vld [vmem:[%s1 + $0x250] sm:$0xff]
      %v526 = vld [vmem:[%s1 + $0x258] sm:$0xff]
      %v527 = vld [vmem:[%s1 + $0x260] sm:$0xff]
      %v528 = vld [vmem:[%s1 + $0x268] sm:$0xff]
      %v529 = vld [vmem:[%s1 + $0x270] sm:$0xff]
      %v530 = vld [vmem:[%s1 + $0x278] sm:$0xff]
      %v531 = vld [vmem:[%s1 + $0x280] sm:$0xff]
      %v532 = vld [vmem:[%s1 + $0x288] sm:$0xff]
      %v533 = vld [vmem:[%s1 + $0x290] sm:$0xff]
      %v534 = vld [vmem:[%s1 + $0x298] sm:$0xff]
      %v535 = vld [vmem:[%s1 + $0x2a0] sm:$0xff]
      %v536 = vld [vmem:[%s1 + $0x2a8] sm:$0xff]
      %v537 = vld [vmem:[%s1 + $0x2b0] sm:$0xff]
      %v538 = vld [vmem:[%s1 + $0x2b8] sm:$0xff]
      %v539 = vld [vmem:[%s1 + $0x2c0] sm:$0xff]
      %v540 = vld [vmem:[%s1 + $0x2c8] sm:$0xff]
      %v541 = vld [vmem:[%s1 + $0x2d0] sm:$0xff]
      %v542 = vld [vmem:[%s1 + $0x2d8] sm:$0xff]
      %v543 = vld [vmem:[%s1 + $0x2e0] sm:$0xff]
      %v544 = vld [vmem:[%s1 + $0x2e8] sm:$0xff]
      %v545 = vld [vmem:[%s1 + $0x2f0] sm:$0xff]
      %v546 = vld [vmem:[%s1 + $0x2f8] sm:$0xff]
      %v547 = vld [vmem:[%s1 + $0x300] sm:$0xff]
      %v548 = vld [vmem:[%s1 + $0x308] sm:$0xff]
      %v549 = vld [vmem:[%s1 + $0x310] sm:$0xff]
      %v550 = vld [vmem:[%s1 + $0x318] sm:$0xff]
      %v551 = vld [vmem:[%s1 + $0x320] sm:$0xff]
      %v552 = vld [vmem:[%s1 + $0x328] sm:$0xff]
      %v553 = vld [vmem:[%s1 + $0x330] sm:$0xff]
      %v554 = vld [vmem:[%s1 + $0x338] sm:$0xff]
      %v555 = vld [vmem:[%s1 + $0x340] sm:$0xff]
      %v556 = vld [vmem:[%s1 + $0x348] sm:$0xff]
      %v557 = vld [vmem:[%s1 + $0x350] sm:$0xff]
      %v558 = vld [vmem:[%s1 + $0x358] sm:$0xff]
      %v559 = vld [vmem:[%s1 + $0x360] sm:$0xff]
      %v560 = vld [vmem:[%s1 + $0x368] sm:$0xff]
      %v561 = vld [vmem:[%s1 + $0x370] sm:$0xff]
      %v562 = vld [vmem:[%s1 + $0x378] sm:$0xff]
      %v563 = vld [vmem:[%s2] sm:$0x1]
      %v565 = vlaneseq
      %v566 = vshrl.u32 %v565, 7
      %v567 = vsub.s32 0, %v566
      %v568 = vrot.slane %v563, %v567
      %570 = vmatprep.subr.mxu0 0.0
      %571 = vmatpush1.msra.mxu0 %v451
      %572 = vmatprep.subr.mxu0 0.0
      %573 = vmatpush1.msra.mxu0 %v452
      %574 = vmatprep.subr.mxu0 0.0
      %575 = vmatpush1.msra.mxu0 %v453
      %576 = vmatprep.subr.mxu0 0.0
      %577 = vmatpush1.msra.mxu0 %v454
      %578 = vmatprep.subr.mxu0 0.0
      %579 = vmatpush1.msra.mxu0 %v455
      %580 = vmatprep.subr.mxu0 0.0
      %581 = vmatpush1.msra.mxu0 %v456
      %582 = vmatprep.subr.mxu0 0.0
      %583 = vmatpush1.msra.mxu0 %v457
      %584 = vmatprep.subr.mxu0 0.0
      %585 = vmatpush1.msra.mxu0 %v458
      %586 = vmatprep.subr.mxu0 0.0
      %587 = vmatpush1.msra.mxu0 %v459
      %588 = vmatprep.subr.mxu0 0.0
      %589 = vmatpush1.msra.mxu0 %v460
      %590 = vmatprep.subr.mxu0 0.0
      %591 = vmatpush1.msra.mxu0 %v461
      %592 = vmatprep.subr.mxu0 0.0
      %593 = vmatpush1.msra.mxu0 %v462
      %594 = vmatprep.subr.mxu0 0.0
      %595 = vmatpush1.msra.mxu0 %v463
      %596 = vmatprep.subr.mxu0 0.0
      %597 = vmatpush1.msra.mxu0 %v464
      %598 = vmatprep.subr.mxu0 0.0
      %599 = vmatpush1.msra.mxu0 %v465
      %600 = vmatprep.subr.mxu0 0.0
      %601 = vmatpush1.msra.mxu0 %v466
      %602 = vmatprep.subr.mxu0 0.0
      %603 = vmatpush1.msra.mxu0 %v467
      %604 = vmatprep.subr.mxu0 0.0
      %605 = vmatpush1.msra.mxu0 %v468
      %606 = vmatprep.subr.mxu0 0.0
      %607 = vmatpush1.msra.mxu0 %v469
      %608 = vmatprep.subr.mxu0 0.0
      %609 = vmatpush1.msra.mxu0 %v470
      %610 = vmatprep.subr.mxu0 0.0
      %611 = vmatpush1.msra.mxu0 %v471
      %612 = vmatprep.subr.mxu0 0.0
      %613 = vmatpush1.msra.mxu0 %v472
      %614 = vmatprep.subr.mxu0 0.0
      %615 = vmatpush1.msra.mxu0 %v473
      %616 = vmatprep.subr.mxu0 0.0
      %617 = vmatpush1.msra.mxu0 %v474
      %618 = vmatprep.subr.mxu0 0.0
      %619 = vmatpush1.msra.mxu0 %v475
      %620 = vmatprep.subr.mxu0 0.0
      %621 = vmatpush1.msra.mxu0 %v476
      %622 = vmatprep.subr.mxu0 0.0
      %623 = vmatpush1.msra.mxu0 %v477
      %624 = vmatprep.subr.mxu0 0.0
      %625 = vmatpush1.msra.mxu0 %v478
      %626 = vmatprep.subr.mxu0 0.0
      %627 = vmatpush1.msra.mxu0 %v479
      %628 = vmatprep.subr.mxu0 0.0
      %629 = vmatpush1.msra.mxu0 %v480
      %630 = vmatprep.subr.mxu0 0.0
      %631 = vmatpush1.msra.mxu0 %v481
      %632 = vmatprep.subr.mxu0 0.0
      %633 = vmatpush1.msra.mxu0 %v482
      %634 = vmatprep.mubr.f32.mxu0 %v340
      %635 = vmatmul.mubr.f32.gmra.mrb[0].mxu0 %v339
      %v636 = vpop.f32.mrb[0].mxu0
      %v637 = vadd.f32 %v568, %v636
      %v638 = vpop.f32.mrb[0].mxu0
      %639 = vmatprep.mubr.f32.mxu0 %v347
      %640 = vmatmul.mubr.f32.gmra.mrb[0].mxu0 %v346
      %v641 = vpop.f32.mrb[0].mxu0
      %v642 = vadd.f32 %v568, %v641
      %v643 = vpop.f32.mrb[0].mxu0
      %644 = vmatprep.mubr.f32.mxu0 %v354
      %645 = vmatmul.mubr.f32.gmra.mrb[0].mxu0 %v353
      %v646 = vpop.f32.mrb[0].mxu0
      %v647 = vadd.f32 %v568, %v646
      %v648 = vpop.f32.mrb[0].mxu0
      %649 = vmatprep.mubr.f32.mxu0 %v361
      %650 = vmatmul.mubr.f32.gmra.mrb[0].mxu0 %v360
      %v651 = vpop.f32.mrb[0].mxu0
      %v652 = vadd.f32 %v568, %v651
      %v653 = vpop.f32.mrb[0].mxu0
      %654 = vmatprep.mubr.f32.mxu0 %v368
      %655 = vmatmul.mubr.f32.gmra.mrb[0].mxu0 %v367
      %v656 = vpop.f32.mrb[0].mxu0
      %v657 = vadd.f32 %v568, %v656
      %v658 = vpop.f32.mrb[0].mxu0
      %659 = vmatprep.mubr.f32.mxu0 %v375
      %660 = vmatmul.mubr.f32.gmra.mrb[0].mxu0 %v374
      %v661 = vpop.f32.mrb[0].mxu0
      %v662 = vadd.f32 %v568, %v661
      %v663 = vpop.f32.mrb[0].mxu0
      %664 = vmatprep.mubr.f32.mxu0 %v382
      %665 = vmatmul.mubr.f32.gmra.mrb[0].mxu0 %v381
      %v666 = vpop.f32.mrb[0].mxu0
      %v667 = vadd.f32 %v568, %v666
      %v668 = vpop.f32.mrb[0].mxu0
      %669 = vmatprep.mubr.f32.mxu0 %v389
      %670 = vmatmul.mubr.f32.gmra.mrb[0].mxu0 %v388
      %v671 = vpop.f32.mrb[0].mxu0
      %v672 = vadd.f32 %v568, %v671
      %v673 = vpop.f32.mrb[0].mxu0
      %674 = vmatprep.mubr.f32.mxu0 %v396
      %675 = vmatmul.mubr.f32.gmra.mrb[0].mxu0 %v395
      %v676 = vpop.f32.mrb[0].mxu0
      %v677 = vadd.f32 %v568, %v676
      %v678 = vpop.f32.mrb[0].mxu0
      %679 = vmatprep.mubr.f32.mxu0 %v403
      %680 = vmatmul.mubr.f32.gmra.mrb[0].mxu0 %v402
      %v681 = vpop.f32.mrb[0].mxu0
      %v682 = vadd.f32 %v568, %v681
      %v683 = vpop.f32.mrb[0].mxu0
      %684 = vmatprep.mubr.f32.mxu0 %v410
      %685 = vmatmul.mubr.f32.gmra.mrb[0].mxu0 %v409
      %v686 = vpop.f32.mrb[0].mxu0
      %v687 = vadd.f32 %v568, %v686
      %v688 = vpop.f32.mrb[0].mxu0
      %689 = vmatprep.mubr.f32.mxu0 %v417
      %690 = vmatmul.mubr.f32.gmra.mrb[0].mxu0 %v416
      %v691 = vpop.f32.mrb[0].mxu0
      %v692 = vadd.f32 %v568, %v691
      %v693 = vpop.f32.mrb[0].mxu0
      %694 = vmatprep.mubr.f32.mxu0 %v424
      %695 = vmatmul.mubr.f32.gmra.mrb[0].mxu0 %v423
      %v696 = vpop.f32.mrb[0].mxu0
      %v697 = vadd.f32 %v568, %v696
      %v698 = vpop.f32.mrb[0].mxu0
      %699 = vmatprep.mubr.f32.mxu0 %v431
      %700 = vmatmul.mubr.f32.gmra.mrb[0].mxu0 %v430
      %v701 = vpop.f32.mrb[0].mxu0
      %v702 = vadd.f32 %v568, %v701
      %v703 = vpop.f32.mrb[0].mxu0
      %704 = vmatprep.mubr.f32.mxu0 %v438
      %705 = vmatmul.mubr.f32.gmra.mrb[0].mxu0 %v437
      %v706 = vpop.f32.mrb[0].mxu0
      %v707 = vadd.f32 %v568, %v706
      %v708 = vpop.f32.mrb[0].mxu0
      %709 = vmatprep.mubr.f32.mxu0 %v445
      %710 = vmatmul.mubr.f32.gmra.mrb[0].mxu0 %v444
      %v711 = vpop.f32.mrb[0].mxu0
      %v712 = vadd.f32 %v568, %v711
      %v713 = vpop.f32.mrb[0].mxu0
      %714 = vdwg.mxu0
      %715 = vmatprep.subr.mxu0 0.0
      %716 = vmatpush1.msra.mxu0 %v483
      %717 = vmatprep.subr.mxu0 0.0
      %718 = vmatpush1.msra.mxu0 %v484
      %719 = vmatprep.subr.mxu0 0.0
      %720 = vmatpush1.msra.mxu0 %v485
      %721 = vmatprep.subr.mxu0 0.0
      %722 = vmatpush1.msra.mxu0 %v486
      %723 = vmatprep.subr.mxu0 0.0
      %724 = vmatpush1.msra.mxu0 %v487
      %725 = vmatprep.subr.mxu0 0.0
      %726 = vmatpush1.msra.mxu0 %v488
      %727 = vmatprep.subr.mxu0 0.0
      %728 = vmatpush1.msra.mxu0 %v489
      %729 = vmatprep.subr.mxu0 0.0
      %730 = vmatpush1.msra.mxu0 %v490
      %731 = vmatprep.subr.mxu0 0.0
      %732 = vmatpush1.msra.mxu0 %v491
      %733 = vmatprep.subr.mxu0 0.0
      %734 = vmatpush1.msra.mxu0 %v492
      %735 = vmatprep.subr.mxu0 0.0
      %736 = vmatpush1.msra.mxu0 %v493
      %737 = vmatprep.subr.mxu0 0.0
      %738 = vmatpush1.msra.mxu0 %v494
      %739 = vmatprep.subr.mxu0 0.0
      %740 = vmatpush1.msra.mxu0 %v495
      %741 = vmatprep.subr.mxu0 0.0
      %742 = vmatpush1.msra.mxu0 %v496
      %743 = vmatprep.subr.mxu0 0.0
      %744 = vmatpush1.msra.mxu0 %v497
      %745 = vmatprep.subr.mxu0 0.0
      %746 = vmatpush1.msra.mxu0 %v498
      %747 = vmatprep.subr.mxu0 0.0
      %748 = vmatpush1.msra.mxu0 %v499
      %749 = vmatprep.subr.mxu0 0.0
      %750 = vmatpush1.msra.mxu0 %v500
      %751 = vmatprep.subr.mxu0 0.0
      %752 = vmatpush1.msra.mxu0 %v501
      %753 = vmatprep.subr.mxu0 0.0
      %754 = vmatpush1.msra.mxu0 %v502
      %755 = vmatprep.subr.mxu0 0.0
      %756 = vmatpush1.msra.mxu0 %v503
      %757 = vmatprep.subr.mxu0 0.0
      %758 = vmatpush1.msra.mxu0 %v504
      %759 = vmatprep.subr.mxu0 0.0
      %760 = vmatpush1.msra.mxu0 %v505
      %761 = vmatprep.subr.mxu0 0.0
      %762 = vmatpush1.msra.mxu0 %v506
      %763 = vmatprep.subr.mxu0 0.0
      %764 = vmatpush1.msra.mxu0 %v507
      %765 = vmatprep.subr.mxu0 0.0
      %766 = vmatpush1.msra.mxu0 %v508
      %767 = vmatprep.subr.mxu0 0.0
      %768 = vmatpush1.msra.mxu0 %v509
      %769 = vmatprep.subr.mxu0 0.0
      %770 = vmatpush1.msra.mxu0 %v510
      %771 = vmatprep.subr.mxu0 0.0
      %772 = vmatpush1.msra.mxu0 %v511
      %773 = vmatprep.subr.mxu0 0.0
      %774 = vmatpush1.msra.mxu0 %v512
      %775 = vmatprep.subr.mxu0 0.0
      %776 = vmatpush1.msra.mxu0 %v513
      %777 = vmatprep.subr.mxu0 0.0
      %778 = vmatpush1.msra.mxu0 %v514
      %779 = vmatprep.mubr.f32.mxu0 %v342
      %780 = vmatmul.mubr.f32.gmra.mrb[0].mxu0 %v341
      %v781 = vpop.f32.mrb[0].mxu0
      %v782 = vadd.f32 %v637, %v781
      %v783 = vpop.f32.mrb[0].mxu0
      %784 = vmatprep.mubr.f32.mxu0 %v349
      %785 = vmatmul.mubr.f32.gmra.mrb[0].mxu0 %v348
      %v786 = vpop.f32.mrb[0].mxu0
      %v787 = vadd.f32 %v642, %v786
      %v788 = vpop.f32.mrb[0].mxu0
      %789 = vmatprep.mubr.f32.mxu0 %v356
      %790 = vmatmul.mubr.f32.gmra.mrb[0].mxu0 %v355
      %v791 = vpop.f32.mrb[0].mxu0
      %v792 = vadd.f32 %v647, %v791
      %v793 = vpop.f32.mrb[0].mxu0
      %794 = vmatprep.mubr.f32.mxu0 %v363
      %795 = vmatmul.mubr.f32.gmra.mrb[0].mxu0 %v362
      %v796 = vpop.f32.mrb[0].mxu0
      %v797 = vadd.f32 %v652, %v796
      %v798 = vpop.f32.mrb[0].mxu0
      %799 = vmatprep.mubr.f32.mxu0 %v370
      %800 = vmatmul.mubr.f32.gmra.mrb[0].mxu0 %v369
      %v801 = vpop.f32.mrb[0].mxu0
      %v802 = vadd.f32 %v657, %v801
      %v803 = vpop.f32.mrb[0].mxu0
      %804 = vmatprep.mubr.f32.mxu0 %v377
      %805 = vmatmul.mubr.f32.gmra.mrb[0].mxu0 %v376
      %v806 = vpop.f32.mrb[0].mxu0
      %v807 = vadd.f32 %v662, %v806
      %v808 = vpop.f32.mrb[0].mxu0
      %809 = vmatprep.mubr.f32.mxu0 %v384
      %810 = vmatmul.mubr.f32.gmra.mrb[0].mxu0 %v383
      %v811 = vpop.f32.mrb[0].mxu0
      %v812 = vadd.f32 %v667, %v811
      %v813 = vpop.f32.mrb[0].mxu0
      %814 = vmatprep.mubr.f32.mxu0 %v391
      %815 = vmatmul.mubr.f32.gmra.mrb[0].mxu0 %v390
      %v816 = vpop.f32.mrb[0].mxu0
      %v817 = vadd.f32 %v672, %v816
      %v818 = vpop.f32.mrb[0].mxu0
      %819 = vmatprep.mubr.f32.mxu0 %v398
      %820 = vmatmul.mubr.f32.gmra.mrb[0].mxu0 %v397
      %v821 = vpop.f32.mrb[0].mxu0
      %v822 = vadd.f32 %v677, %v821
      %v823 = vpop.f32.mrb[0].mxu0
      %824 = vmatprep.mubr.f32.mxu0 %v405
      %825 = vmatmul.mubr.f32.gmra.mrb[0].mxu0 %v404
      %v826 = vpop.f32.mrb[0].mxu0
      %v827 = vadd.f32 %v682, %v826
      %v828 = vpop.f32.mrb[0].mxu0
      %829 = vmatprep.mubr.f32.mxu0 %v412
      %830 = vmatmul.mubr.f32.gmra.mrb[0].mxu0 %v411
      %v831 = vpop.f32.mrb[0].mxu0
      %v832 = vadd.f32 %v687, %v831
      %v833 = vpop.f32.mrb[0].mxu0
      %834 = vmatprep.mubr.f32.mxu0 %v419
      %835 = vmatmul.mubr.f32.gmra.mrb[0].mxu0 %v418
      %v836 = vpop.f32.mrb[0].mxu0
      %v837 = vadd.f32 %v692, %v836
      %v838 = vpop.f32.mrb[0].mxu0
      %839 = vmatprep.mubr.f32.mxu0 %v426
      %840 = vmatmul.mubr.f32.gmra.mrb[0].mxu0 %v425
      %v841 = vpop.f32.mrb[0].mxu0
      %v842 = vadd.f32 %v697, %v841
      %v843 = vpop.f32.mrb[0].mxu0
      %844 = vmatprep.mubr.f32.mxu0 %v433
      %845 = vmatmul.mubr.f32.gmra.mrb[0].mxu0 %v432
      %v846 = vpop.f32.mrb[0].mxu0
      %v847 = vadd.f32 %v702, %v846
      %v848 = vpop.f32.mrb[0].mxu0
      %849 = vmatprep.mubr.f32.mxu0 %v440
      %850 = vmatmul.mubr.f32.gmra.mrb[0].mxu0 %v439
      %v851 = vpop.f32.mrb[0].mxu0
      %v852 = vadd.f32 %v707, %v851
      %v853 = vpop.f32.mrb[0].mxu0
      %854 = vmatprep.mubr.f32.mxu0 %v447
      %855 = vmatmul.mubr.f32.gmra.mrb[0].mxu0 %v446
      %v856 = vpop.f32.mrb[0].mxu0
      %v857 = vadd.f32 %v712, %v856
      %v858 = vpop.f32.mrb[0].mxu0
      %859 = vdwg.mxu0
      %860 = vmatprep.subr.mxu0 0.0
      %861 = vmatpush1.msra.mxu0 %v515
      %862 = vmatprep.subr.mxu0 0.0
      %863 = vmatpush1.msra.mxu0 %v516
      %864 = vmatprep.subr.mxu0 0.0
      %865 = vmatpush1.msra.mxu0 %v517
      %866 = vmatprep.subr.mxu0 0.0
      %867 = vmatpush1.msra.mxu0 %v518
      %868 = vmatprep.subr.mxu0 0.0
      %869 = vmatpush1.msra.mxu0 %v519
      %870 = vmatprep.subr.mxu0 0.0
      %871 = vmatpush1.msra.mxu0 %v520
      %872 = vmatprep.subr.mxu0 0.0
      %873 = vmatpush1.msra.mxu0 %v521
      %874 = vmatprep.subr.mxu0 0.0
      %875 = vmatpush1.msra.mxu0 %v522
      %876 = vmatprep.subr.mxu0 0.0
      %877 = vmatpush1.msra.mxu0 %v523
      %878 = vmatprep.subr.mxu0 0.0
      %879 = vmatpush1.msra.mxu0 %v524
      %880 = vmatprep.subr.mxu0 0.0
      %881 = vmatpush1.msra.mxu0 %v525
      %882 = vmatprep.subr.mxu0 0.0
      %883 = vmatpush1.msra.mxu0 %v526
      %884 = vmatprep.subr.mxu0 0.0
      %885 = vmatpush1.msra.mxu0 %v527
      %886 = vmatprep.subr.mxu0 0.0
      %887 = vmatpush1.msra.mxu0 %v528
      %888 = vmatprep.subr.mxu0 0.0
      %889 = vmatpush1.msra.mxu0 %v529
      %890 = vmatprep.subr.mxu0 0.0
      %891 = vmatpush1.msra.mxu0 %v530
      %892 = vmatprep.subr.mxu0 0.0
      %893 = vmatpush1.msra.mxu0 %v531
      %894 = vmatprep.subr.mxu0 0.0
      %895 = vmatpush1.msra.mxu0 %v532
      %896 = vmatprep.subr.mxu0 0.0
      %897 = vmatpush1.msra.mxu0 %v533
      %898 = vmatprep.subr.mxu0 0.0
      %899 = vmatpush1.msra.mxu0 %v534
      %900 = vmatprep.subr.mxu0 0.0
      %901 = vmatpush1.msra.mxu0 %v535
      %902 = vmatprep.subr.mxu0 0.0
      %903 = vmatpush1.msra.mxu0 %v536
      %904 = vmatprep.subr.mxu0 0.0
      %905 = vmatpush1.msra.mxu0 %v537
      %906 = vmatprep.subr.mxu0 0.0
      %907 = vmatpush1.msra.mxu0 %v538
      %908 = vmatprep.subr.mxu0 0.0
      %909 = vmatpush1.msra.mxu0 %v539
      %910 = vmatprep.subr.mxu0 0.0
      %911 = vmatpush1.msra.mxu0 %v540
      %912 = vmatprep.subr.mxu0 0.0
      %913 = vmatpush1.msra.mxu0 %v541
      %914 = vmatprep.subr.mxu0 0.0
      %915 = vmatpush1.msra.mxu0 %v542
      %916 = vmatprep.subr.mxu0 0.0
      %917 = vmatpush1.msra.mxu0 %v543
      %918 = vmatprep.subr.mxu0 0.0
      %919 = vmatpush1.msra.mxu0 %v544
      %920 = vmatprep.subr.mxu0 0.0
      %921 = vmatpush1.msra.mxu0 %v545
      %922 = vmatprep.subr.mxu0 0.0
      %923 = vmatpush1.msra.mxu0 %v546
      %924 = vmatprep.mubr.f32.mxu0 %v344
      %925 = vmatmul.mubr.f32.gmra.mrb[0].mxu0 %v343
      %v926 = vpop.f32.mrb[0].mxu0
      %v927 = vadd.f32 %v782, %v926
      %v928 = vpop.f32.mrb[0].mxu0
      %929 = vmatprep.mubr.f32.mxu0 %v351
      %930 = vmatmul.mubr.f32.gmra.mrb[0].mxu0 %v350
      %v931 = vpop.f32.mrb[0].mxu0
      %v932 = vadd.f32 %v787, %v931
      %v933 = vpop.f32.mrb[0].mxu0
      %934 = vmatprep.mubr.f32.mxu0 %v358
      %935 = vmatmul.mubr.f32.gmra.mrb[0].mxu0 %v357
      %v936 = vpop.f32.mrb[0].mxu0
      %v937 = vadd.f32 %v792, %v936
      %v938 = vpop.f32.mrb[0].mxu0
      %939 = vmatprep.mubr.f32.mxu0 %v365
      %940 = vmatmul.mubr.f32.gmra.mrb[0].mxu0 %v364
      %v941 = vpop.f32.mrb[0].mxu0
      %v942 = vadd.f32 %v797, %v941
      %v943 = vpop.f32.mrb[0].mxu0
      %944 = vmatprep.mubr.f32.mxu0 %v372
      %945 = vmatmul.mubr.f32.gmra.mrb[0].mxu0 %v371
      %v946 = vpop.f32.mrb[0].mxu0
      %v947 = vadd.f32 %v802, %v946
      %v948 = vpop.f32.mrb[0].mxu0
      %949 = vmatprep.mubr.f32.mxu0 %v379
      %950 = vmatmul.mubr.f32.gmra.mrb[0].mxu0 %v378
      %v951 = vpop.f32.mrb[0].mxu0
      %v952 = vadd.f32 %v807, %v951
      %v953 = vpop.f32.mrb[0].mxu0
      %954 = vmatprep.mubr.f32.mxu0 %v386
      %955 = vmatmul.mubr.f32.gmra.mrb[0].mxu0 %v385
      %v956 = vpop.f32.mrb[0].mxu0
      %v957 = vadd.f32 %v812, %v956
      %v958 = vpop.f32.mrb[0].mxu0
      %959 = vmatprep.mubr.f32.mxu0 %v393
      %960 = vmatmul.mubr.f32.gmra.mrb[0].mxu0 %v392
      %v961 = vpop.f32.mrb[0].mxu0
      %v962 = vadd.f32 %v817, %v961
      %v963 = vpop.f32.mrb[0].mxu0
      %964 = vmatprep.mubr.f32.mxu0 %v400
      %965 = vmatmul.mubr.f32.gmra.mrb[0].mxu0 %v399
      %v966 = vpop.f32.mrb[0].mxu0
      %v967 = vadd.f32 %v822, %v966
      %v968 = vpop.f32.mrb[0].mxu0
      %969 = vmatprep.mubr.f32.mxu0 %v407
      %970 = vmatmul.mubr.f32.gmra.mrb[0].mxu0 %v406
      %v971 = vpop.f32.mrb[0].mxu0
      %v972 = vadd.f32 %v827, %v971
      %v973 = vpop.f32.mrb[0].mxu0
      %974 = vmatprep.mubr.f32.mxu0 %v414
      %975 = vmatmul.mubr.f32.gmra.mrb[0].mxu0 %v413
      %v976 = vpop.f32.mrb[0].mxu0
      %v977 = vadd.f32 %v832, %v976
      %v978 = vpop.f32.mrb[0].mxu0
      %979 = vmatprep.mubr.f32.mxu0 %v421
      %980 = vmatmul.mubr.f32.gmra.mrb[0].mxu0 %v420
      %v981 = vpop.f32.mrb[0].mxu0
      %v982 = vadd.f32 %v837, %v981
      %v983 = vpop.f32.mrb[0].mxu0
      %984 = vmatprep.mubr.f32.mxu0 %v428
      %985 = vmatmul.mubr.f32.gmra.mrb[0].mxu0 %v427
      %v986 = vpop.f32.mrb[0].mxu0
      %v987 = vadd.f32 %v842, %v986
      %v988 = vpop.f32.mrb[0].mxu0
      %989 = vmatprep.mubr.f32.mxu0 %v435
      %990 = vmatmul.mubr.f32.gmra.mrb[0].mxu0 %v434
      %v991 = vpop.f32.mrb[0].mxu0
      %v992 = vadd.f32 %v847, %v991
      %v993 = vpop.f32.mrb[0].mxu0
      %994 = vmatprep.mubr.f32.mxu0 %v442
      %995 = vmatmul.mubr.f32.gmra.mrb[0].mxu0 %v441
      %v996 = vpop.f32.mrb[0].mxu0
      %v997 = vadd.f32 %v852, %v996
      %v998 = vpop.f32.mrb[0].mxu0
      %999 = vmatprep.mubr.f32.mxu0 %v449
      %1000 = vmatmul.mubr.f32.gmra.mrb[0].mxu0 %v448
      %v1001 = vpop.f32.mrb[0].mxu0
      %v1002 = vadd.f32 %v857, %v1001
      %v1003 = vpop.f32.mrb[0].mxu0
      %1004 = vdwg.mxu0
      %1005 = vmatprep.subr.mxu0 0.0
      %1006 = vmatpush1.msra.mxu0 %v547
      %1007 = vmatprep.subr.mxu0 0.0
      %1008 = vmatpush1.msra.mxu0 %v548
      %1009 = vmatprep.subr.mxu0 0.0
      %1010 = vmatpush1.msra.mxu0 %v549
      %1011 = vmatprep.subr.mxu0 0.0
      %1012 = vmatpush1.msra.mxu0 %v550
      %1013 = vmatprep.subr.mxu0 0.0
      %1014 = vmatpush1.msra.mxu0 %v551
      %1015 = vmatprep.subr.mxu0 0.0
      %1016 = vmatpush1.msra.mxu0 %v552
      %1017 = vmatprep.subr.mxu0 0.0
      %1018 = vmatpush1.msra.mxu0 %v553
      %1019 = vmatprep.subr.mxu0 0.0
      %1020 = vmatpush1.msra.mxu0 %v554
      %1021 = vmatprep.subr.mxu0 0.0
      %1022 = vmatpush1.msra.mxu0 %v555
      %1023 = vmatprep.subr.mxu0 0.0
      %1024 = vmatpush1.msra.mxu0 %v556
      %1025 = vmatprep.subr.mxu0 0.0
      %1026 = vmatpush1.msra.mxu0 %v557
      %1027 = vmatprep.subr.mxu0 0.0
      %1028 = vmatpush1.msra.mxu0 %v558
      %1029 = vmatprep.subr.mxu0 0.0
      %1030 = vmatpush1.msra.mxu0 %v559
      %1031 = vmatprep.subr.mxu0 0.0
      %1032 = vmatpush1.msra.mxu0 %v560
      %1033 = vmatprep.subr.mxu0 0.0
      %1034 = vmatpush1.msra.mxu0 %v561
      %1035 = vmatprep.subr.mxu0 0.0
      %1036 = vmatpush1.msra.mxu0 %v562
      %1037 = vmatprep.subr.mxu0 0.0
      %1038 = vmatpush1.msra.mxu0 0.0
      %1039 = vmatprep.subr.mxu0 0.0
      %1040 = vmatpush1.msra.mxu0 0.0
      %1041 = vmatprep.subr.mxu0 0.0
      %1042 = vmatpush1.msra.mxu0 0.0
      %1043 = vmatprep.subr.mxu0 0.0
      %1044 = vmatpush1.msra.mxu0 0.0
      %1045 = vmatprep.subr.mxu0 0.0
      %1046 = vmatpush1.msra.mxu0 0.0
      %1047 = vmatprep.subr.mxu0 0.0
      %1048 = vmatpush1.msra.mxu0 0.0
      %1049 = vmatprep.subr.mxu0 0.0
      %1050 = vmatpush1.msra.mxu0 0.0
      %1051 = vmatprep.subr.mxu0 0.0
      %1052 = vmatpush1.msra.mxu0 0.0
      %1053 = vmatprep.subr.mxu0 0.0
      %1054 = vmatpush1.msra.mxu0 0.0
      %1055 = vmatprep.subr.mxu0 0.0
      %1056 = vmatpush1.msra.mxu0 0.0
      %1057 = vmatprep.subr.mxu0 0.0
      %1058 = vmatpush1.msra.mxu0 0.0
      %1059 = vmatprep.subr.mxu0 0.0
      %1060 = vmatpush1.msra.mxu0 0.0
      %1061 = vmatprep.subr.mxu0 0.0
      %1062 = vmatpush1.msra.mxu0 0.0
      %1063 = vmatprep.subr.mxu0 0.0
      %1064 = vmatpush1.msra.mxu0 0.0
      %1065 = vmatprep.subr.mxu0 0.0
      %1066 = vmatpush1.msra.mxu0 0.0
      %1067 = vmatprep.subr.mxu0 0.0
      %1068 = vmatpush1.msra.mxu0 0.0
      %1069 = vmatprep.mubr.f32.mxu0 0.0
      %1070 = vmatmul.mubr.f32.gmra.mrb[0].mxu0 %v345
      %v1071 = vpop.f32.mrb[0].mxu0
      %v1072 = vadd.f32 %v927, %v1071
      %v1073 = vpop.f32.mrb[0].mxu0
      %1074 = vmatprep.mubr.f32.mxu0 0.0
      %1075 = vmatmul.mubr.f32.gmra.mrb[0].mxu0 %v352
      %v1076 = vpop.f32.mrb[0].mxu0
      %v1077 = vadd.f32 %v932, %v1076
      %v1078 = vpop.f32.mrb[0].mxu0
      %1079 = vmatprep.mubr.f32.mxu0 0.0
      %1080 = vmatmul.mubr.f32.gmra.mrb[0].mxu0 %v359
      %v1081 = vpop.f32.mrb[0].mxu0
      %v1082 = vadd.f32 %v937, %v1081
      %v1083 = vpop.f32.mrb[0].mxu0
      %1084 = vmatprep.mubr.f32.mxu0 0.0
      %1085 = vmatmul.mubr.f32.gmra.mrb[0].mxu0 %v366
      %v1086 = vpop.f32.mrb[0].mxu0
      %v1087 = vadd.f32 %v942, %v1086
      %v1088 = vpop.f32.mrb[0].mxu0
      %1089 = vmatprep.mubr.f32.mxu0 0.0
      %1090 = vmatmul.mubr.f32.gmra.mrb[0].mxu0 %v373
      %v1091 = vpop.f32.mrb[0].mxu0
      %v1092 = vadd.f32 %v947, %v1091
      %v1093 = vpop.f32.mrb[0].mxu0
      %1094 = vmatprep.mubr.f32.mxu0 0.0
      %1095 = vmatmul.mubr.f32.gmra.mrb[0].mxu0 %v380
      %v1096 = vpop.f32.mrb[0].mxu0
      %v1097 = vadd.f32 %v952, %v1096
      %v1098 = vpop.f32.mrb[0].mxu0
      %1099 = vmatprep.mubr.f32.mxu0 0.0
      %1100 = vmatmul.mubr.f32.gmra.mrb[0].mxu0 %v387
      %v1101 = vpop.f32.mrb[0].mxu0
      %v1102 = vadd.f32 %v957, %v1101
      %v1103 = vpop.f32.mrb[0].mxu0
      %1104 = vmatprep.mubr.f32.mxu0 0.0
      %1105 = vmatmul.mubr.f32.gmra.mrb[0].mxu0 %v394
      %v1106 = vpop.f32.mrb[0].mxu0
      %v1107 = vadd.f32 %v962, %v1106
      %v1108 = vpop.f32.mrb[0].mxu0
      %1109 = vmatprep.mubr.f32.mxu0 0.0
      %1110 = vmatmul.mubr.f32.gmra.mrb[0].mxu0 %v401
      %v1111 = vpop.f32.mrb[0].mxu0
      %v1112 = vadd.f32 %v967, %v1111
      %v1113 = vpop.f32.mrb[0].mxu0
      %1114 = vmatprep.mubr.f32.mxu0 0.0
      %1115 = vmatmul.mubr.f32.gmra.mrb[0].mxu0 %v408
      %v1116 = vpop.f32.mrb[0].mxu0
      %v1117 = vadd.f32 %v972, %v1116
      %v1118 = vpop.f32.mrb[0].mxu0
      %1119 = vmatprep.mubr.f32.mxu0 0.0
      %1120 = vmatmul.mubr.f32.gmra.mrb[0].mxu0 %v415
      %v1121 = vpop.f32.mrb[0].mxu0
      %v1122 = vadd.f32 %v977, %v1121
      %v1123 = vpop.f32.mrb[0].mxu0
      %1124 = vmatprep.mubr.f32.mxu0 0.0
      %1125 = vmatmul.mubr.f32.gmra.mrb[0].mxu0 %v422
      %v1126 = vpop.f32.mrb[0].mxu0
      %v1127 = vadd.f32 %v982, %v1126
      %v1128 = vpop.f32.mrb[0].mxu0
      %1129 = vmatprep.mubr.f32.mxu0 0.0
      %1130 = vmatmul.mubr.f32.gmra.mrb[0].mxu0 %v429
      %v1131 = vpop.f32.mrb[0].mxu0
      %v1132 = vadd.f32 %v987, %v1131
      %v1133 = vpop.f32.mrb[0].mxu0
      %1134 = vmatprep.mubr.f32.mxu0 0.0
      %1135 = vmatmul.mubr.f32.gmra.mrb[0].mxu0 %v436
      %v1136 = vpop.f32.mrb[0].mxu0
      %v1137 = vadd.f32 %v992, %v1136
      %v1138 = vpop.f32.mrb[0].mxu0
      %1139 = vmatprep.mubr.f32.mxu0 0.0
      %1140 = vmatmul.mubr.f32.gmra.mrb[0].mxu0 %v443
      %v1141 = vpop.f32.mrb[0].mxu0
      %v1142 = vadd.f32 %v997, %v1141
      %v1143 = vpop.f32.mrb[0].mxu0
      %1144 = vmatprep.mubr.f32.mxu0 0.0
      %1145 = vmatmul.mubr.f32.gmra.mrb[0].mxu0 %v450
      %v1146 = vpop.f32.mrb[0].mxu0
      %v1147 = vadd.f32 %v1002, %v1146
      %v1148 = vpop.f32.mrb[0].mxu0
      %1149 = vdwg.mxu0
      %v1150 = vmax.f32 %v1072, 0.0
      %v1151 = vmax.f32 %v1077, 0.0
      %v1152 = vmax.f32 %v1082, 0.0
      %v1153 = vmax.f32 %v1087, 0.0
      %v1154 = vmax.f32 %v1092, 0.0
      %v1155 = vmax.f32 %v1097, 0.0
      %v1156 = vmax.f32 %v1102, 0.0
      %v1157 = vmax.f32 %v1107, 0.0
      %v1158 = vmax.f32 %v1112, 0.0
      %v1159 = vmax.f32 %v1117, 0.0
      %v1160 = vmax.f32 %v1122, 0.0
      %v1161 = vmax.f32 %v1127, 0.0
      %v1162 = vmax.f32 %v1132, 0.0
      %v1163 = vmax.f32 %v1137, 0.0
      %v1164 = vmax.f32 %v1142, 0.0
      %v1165 = vmax.f32 %v1147, 0.0
      %v1166 = vld [vmem:[%s3] sm:$0xff]
      %v1167 = vld [vmem:[%s3 + $0x8] sm:$0xff]
      %v1168 = vld [vmem:[%s3 + $0x10] sm:$0xff]
      %v1169 = vld [vmem:[%s3 + $0x18] sm:$0xff]
      %v1170 = vld [vmem:[%s4] sm:$0x1]
      %v1172 = vlaneseq
      %v1173 = vshrl.u32 %v1172, 7
      %v1174 = vsub.s32 0, %v1173
      %v1175 = vrot.slane %v1170, %v1174
      %vm1177 = vcmask 261120
      %v1179 = vsel %vm1177, %v1150, 0
      %v1182 = vsel %vm1177, %v1151, 0
      %v1185 = vsel %vm1177, %v1152, 0
      %v1188 = vsel %vm1177, %v1153, 0
      %v1191 = vsel %vm1177, %v1154, 0
      %v1194 = vsel %vm1177, %v1155, 0
      %v1197 = vsel %vm1177, %v1156, 0
      %v1200 = vsel %vm1177, %v1157, 0
      %v1203 = vsel %vm1177, %v1158, 0
      %v1206 = vsel %vm1177, %v1159, 0
      %v1209 = vsel %vm1177, %v1160, 0
      %v1212 = vsel %vm1177, %v1161, 0
      %v1215 = vsel %vm1177, %v1162, 0
      %v1218 = vsel %vm1177, %v1163, 0
      %v1221 = vsel %vm1177, %v1164, 0
      %v1224 = vsel %vm1177, %v1165, 0
      %1226 = vmatprep.subr.mxu0 0.0
      %1227 = vmatpush1.msra.mxu0 %v1166
      %1228 = vmatprep.subr.mxu0 0.0
      %1229 = vmatpush1.msra.mxu0 %v1167
      %1230 = vmatprep.subr.mxu0 0.0
      %1231 = vmatpush1.msra.mxu0 %v1168
      %1232 = vmatprep.subr.mxu0 0.0
      %1233 = vmatpush1.msra.mxu0 %v1169
      %1234 = vmatprep.subr.mxu0 0.0
      %1235 = vmatpush1.msra.mxu0 0.0
      %1236 = vmatprep.subr.mxu0 0.0
      %1237 = vmatpush1.msra.mxu0 0.0
      %1238 = vmatprep.subr.mxu0 0.0
      %1239 = vmatpush1.msra.mxu0 0.0
      %1240 = vmatprep.subr.mxu0 0.0
      %1241 = vmatpush1.msra.mxu0 0.0
      %1242 = vmatprep.subr.mxu0 0.0
      %1243 = vmatpush1.msra.mxu0 0.0
      %1244 = vmatprep.subr.mxu0 0.0
      %1245 = vmatpush1.msra.mxu0 0.0
      %1246 = vmatprep.subr.mxu0 0.0
      %1247 = vmatpush1.msra.mxu0 0.0
      %1248 = vmatprep.subr.mxu0 0.0
      %1249 = vmatpush1.msra.mxu0 0.0
      %1250 = vmatprep.subr.mxu0 0.0
      %1251 = vmatpush1.msra.mxu0 0.0
      %1252 = vmatprep.subr.mxu0 0.0
      %1253 = vmatpush1.msra.mxu0 0.0
      %1254 = vmatprep.subr.mxu0 0.0
      %1255 = vmatpush1.msra.mxu0 0.0
      %1256 = vmatprep.subr.mxu0 0.0
      %1257 = vmatpush1.msra.mxu0 0.0
      %1258 = vmatprep.subr.mxu0 0.0
      %1259 = vmatpush1.msra.mxu0 0.0
      %1260 = vmatprep.subr.mxu0 0.0
      %1261 = vmatpush1.msra.mxu0 0.0
      %1262 = vmatprep.subr.mxu0 0.0
      %1263 = vmatpush1.msra.mxu0 0.0
      %1264 = vmatprep.subr.mxu0 0.0
      %1265 = vmatpush1.msra.mxu0 0.0
      %1266 = vmatprep.subr.mxu0 0.0
      %1267 = vmatpush1.msra.mxu0 0.0
      %1268 = vmatprep.subr.mxu0 0.0
      %1269 = vmatpush1.msra.mxu0 0.0
      %1270 = vmatprep.subr.mxu0 0.0
      %1271 = vmatpush1.msra.mxu0 0.0
      %1272 = vmatprep.subr.mxu0 0.0
      %1273 = vmatpush1.msra.mxu0 0.0
      %1274 = vmatprep.subr.mxu0 0.0
      %1275 = vmatpush1.msra.mxu0 0.0
      %1276 = vmatprep.subr.mxu0 0.0
      %1277 = vmatpush1.msra.mxu0 0.0
      %1278 = vmatprep.subr.mxu0 0.0
      %1279 = vmatpush1.msra.mxu0 0.0
      %1280 = vmatprep.subr.mxu0 0.0
      %1281 = vmatpush1.msra.mxu0 0.0
      %1282 = vmatprep.subr.mxu0 0.0
      %1283 = vmatpush1.msra.mxu0 0.0
      %1284 = vmatprep.subr.mxu0 0.0
      %1285 = vmatpush1.msra.mxu0 0.0
      %1286 = vmatprep.subr.mxu0 0.0
      %1287 = vmatpush1.msra.mxu0 0.0
      %1288 = vmatprep.subr.mxu0 0.0
      %1289 = vmatpush1.msra.mxu0 0.0
      %1290 = vmatprep.mubr.f32.mxu0 0.0
      %1291 = vmatmul.mubr.f32.gmra.mrb[0].mxu0 %v1179
      %v1292 = vpop.f32.mrb[0].mxu0
      %v1293 = vadd.f32 %v1175, %v1292
      %v1294 = vpop.f32.mrb[0].mxu0
      %1295 = vmatprep.mubr.f32.mxu0 0.0
      %1296 = vmatmul.mubr.f32.gmra.mrb[0].mxu0 %v1182
      %v1297 = vpop.f32.mrb[0].mxu0
      %v1298 = vadd.f32 %v1175, %v1297
      %v1299 = vpop.f32.mrb[0].mxu0
      %1300 = vmatprep.mubr.f32.mxu0 0.0
      %1301 = vmatmul.mubr.f32.gmra.mrb[0].mxu0 %v1185
      %v1302 = vpop.f32.mrb[0].mxu0
      %v1303 = vadd.f32 %v1175, %v1302
      %v1304 = vpop.f32.mrb[0].mxu0
      %1305 = vmatprep.mubr.f32.mxu0 0.0
      %1306 = vmatmul.mubr.f32.gmra.mrb[0].mxu0 %v1188
      %v1307 = vpop.f32.mrb[0].mxu0
      %v1308 = vadd.f32 %v1175, %v1307
      %v1309 = vpop.f32.mrb[0].mxu0
      %1310 = vmatprep.mubr.f32.mxu0 0.0
      %1311 = vmatmul.mubr.f32.gmra.mrb[0].mxu0 %v1191
      %v1312 = vpop.f32.mrb[0].mxu0
      %v1313 = vadd.f32 %v1175, %v1312
      %v1314 = vpop.f32.mrb[0].mxu0
      %1315 = vmatprep.mubr.f32.mxu0 0.0
      %1316 = vmatmul.mubr.f32.gmra.mrb[0].mxu0 %v1194
      %v1317 = vpop.f32.mrb[0].mxu0
      %v1318 = vadd.f32 %v1175, %v1317
      %v1319 = vpop.f32.mrb[0].mxu0
      %1320 = vmatprep.mubr.f32.mxu0 0.0
      %1321 = vmatmul.mubr.f32.gmra.mrb[0].mxu0 %v1197
      %v1322 = vpop.f32.mrb[0].mxu0
      %v1323 = vadd.f32 %v1175, %v1322
      %v1324 = vpop.f32.mrb[0].mxu0
      %1325 = vmatprep.mubr.f32.mxu0 0.0
      %1326 = vmatmul.mubr.f32.gmra.mrb[0].mxu0 %v1200
      %v1327 = vpop.f32.mrb[0].mxu0
      %v1328 = vadd.f32 %v1175, %v1327
      %v1329 = vpop.f32.mrb[0].mxu0
      %1330 = vmatprep.mubr.f32.mxu0 0.0
      %1331 = vmatmul.mubr.f32.gmra.mrb[0].mxu0 %v1203
      %v1332 = vpop.f32.mrb[0].mxu0
      %v1333 = vadd.f32 %v1175, %v1332
      %v1334 = vpop.f32.mrb[0].mxu0
      %1335 = vmatprep.mubr.f32.mxu0 0.0
      %1336 = vmatmul.mubr.f32.gmra.mrb[0].mxu0 %v1206
      %v1337 = vpop.f32.mrb[0].mxu0
      %v1338 = vadd.f32 %v1175, %v1337
      %v1339 = vpop.f32.mrb[0].mxu0
      %1340 = vmatprep.mubr.f32.mxu0 0.0
      %1341 = vmatmul.mubr.f32.gmra.mrb[0].mxu0 %v1209
      %v1342 = vpop.f32.mrb[0].mxu0
      %v1343 = vadd.f32 %v1175, %v1342
      %v1344 = vpop.f32.mrb[0].mxu0
      %1345 = vmatprep.mubr.f32.mxu0 0.0
      %1346 = vmatmul.mubr.f32.gmra.mrb[0].mxu0 %v1212
      %v1347 = vpop.f32.mrb[0].mxu0
      %v1348 = vadd.f32 %v1175, %v1347
      %v1349 = vpop.f32.mrb[0].mxu0
      %1350 = vmatprep.mubr.f32.mxu0 0.0
      %1351 = vmatmul.mubr.f32.gmra.mrb[0].mxu0 %v1215
      %v1352 = vpop.f32.mrb[0].mxu0
      %v1353 = vadd.f32 %v1175, %v1352
      %v1354 = vpop.f32.mrb[0].mxu0
      %1355 = vmatprep.mubr.f32.mxu0 0.0
      %1356 = vmatmul.mubr.f32.gmra.mrb[0].mxu0 %v1218
      %v1357 = vpop.f32.mrb[0].mxu0
      %v1358 = vadd.f32 %v1175, %v1357
      %v1359 = vpop.f32.mrb[0].mxu0
      %1360 = vmatprep.mubr.f32.mxu0 0.0
      %1361 = vmatmul.mubr.f32.gmra.mrb[0].mxu0 %v1221
      %v1362 = vpop.f32.mrb[0].mxu0
      %v1363 = vadd.f32 %v1175, %v1362
      %v1364 = vpop.f32.mrb[0].mxu0
      %1365 = vmatprep.mubr.f32.mxu0 0.0
      %1366 = vmatmul.mubr.f32.gmra.mrb[0].mxu0 %v1224
      %v1367 = vpop.f32.mrb[0].mxu0
      %v1368 = vadd.f32 %v1175, %v1367
      %v1369 = vpop.f32.mrb[0].mxu0
      %1370 = vdwg.mxu0
      %v1371 = vmax.f32 %v1293, 0.0
      %v1372 = vmax.f32 %v1298, 0.0
      %v1373 = vmax.f32 %v1303, 0.0
      %v1374 = vmax.f32 %v1308, 0.0
      %v1375 = vmax.f32 %v1313, 0.0
      %v1376 = vmax.f32 %v1318, 0.0
      %v1377 = vmax.f32 %v1323, 0.0
      %v1378 = vmax.f32 %v1328, 0.0
      %v1379 = vmax.f32 %v1333, 0.0
      %v1380 = vmax.f32 %v1338, 0.0
      %v1381 = vmax.f32 %v1343, 0.0
      %v1382 = vmax.f32 %v1348, 0.0
      %v1383 = vmax.f32 %v1353, 0.0
      %v1384 = vmax.f32 %v1358, 0.0
      %v1385 = vmax.f32 %v1363, 0.0
      %v1386 = vmax.f32 %v1368, 0.0
      %v1387 = vld [vmem:[%s5] sm:$0xff]
      %v1388 = vld [vmem:[%s5 + $0x8] sm:$0xff]
      %v1389 = vld [vmem:[%s5 + $0x10] sm:$0xff]
      %v1390 = vld [vmem:[%s5 + $0x18] sm:$0xff]
      %v1391 = vld [vmem:[%s6] sm:$0x1]
      %v1393 = vlaneseq
      %v1394 = vshrl.u32 %v1393, 7
      %v1395 = vsub.s32 0, %v1394
      %v1396 = vrot.slane %v1391, %v1395
      %v1399 = vsel %vm1177, %v1371, 0
      %v1402 = vsel %vm1177, %v1372, 0
      %v1405 = vsel %vm1177, %v1373, 0
      %v1408 = vsel %vm1177, %v1374, 0
      %v1411 = vsel %vm1177, %v1375, 0
      %v1414 = vsel %vm1177, %v1376, 0
      %v1417 = vsel %vm1177, %v1377, 0
      %v1420 = vsel %vm1177, %v1378, 0
      %v1423 = vsel %vm1177, %v1379, 0
      %v1426 = vsel %vm1177, %v1380, 0
      %v1429 = vsel %vm1177, %v1381, 0
      %v1432 = vsel %vm1177, %v1382, 0
      %v1435 = vsel %vm1177, %v1383, 0
      %v1438 = vsel %vm1177, %v1384, 0
      %v1441 = vsel %vm1177, %v1385, 0
      %v1444 = vsel %vm1177, %v1386, 0
      %1446 = vmatprep.subr.mxu0 0.0
      %1447 = vmatpush1.msra.mxu0 %v1387
      %1448 = vmatprep.subr.mxu0 0.0
      %1449 = vmatpush1.msra.mxu0 %v1388
      %1450 = vmatprep.subr.mxu0 0.0
      %1451 = vmatpush1.msra.mxu0 %v1389
      %1452 = vmatprep.subr.mxu0 0.0
      %1453 = vmatpush1.msra.mxu0 %v1390
      %1454 = vmatprep.subr.mxu0 0.0
      %1455 = vmatpush1.msra.mxu0 0.0
      %1456 = vmatprep.subr.mxu0 0.0
      %1457 = vmatpush1.msra.mxu0 0.0
      %1458 = vmatprep.subr.mxu0 0.0
      %1459 = vmatpush1.msra.mxu0 0.0
      %1460 = vmatprep.subr.mxu0 0.0
      %1461 = vmatpush1.msra.mxu0 0.0
      %1462 = vmatprep.subr.mxu0 0.0
      %1463 = vmatpush1.msra.mxu0 0.0
      %1464 = vmatprep.subr.mxu0 0.0
      %1465 = vmatpush1.msra.mxu0 0.0
      %1466 = vmatprep.subr.mxu0 0.0
      %1467 = vmatpush1.msra.mxu0 0.0
      %1468 = vmatprep.subr.mxu0 0.0
      %1469 = vmatpush1.msra.mxu0 0.0
      %1470 = vmatprep.subr.mxu0 0.0
      %1471 = vmatpush1.msra.mxu0 0.0
      %1472 = vmatprep.subr.mxu0 0.0
      %1473 = vmatpush1.msra.mxu0 0.0
      %1474 = vmatprep.subr.mxu0 0.0
      %1475 = vmatpush1.msra.mxu0 0.0
      %1476 = vmatprep.subr.mxu0 0.0
      %1477 = vmatpush1.msra.mxu0 0.0
      %1478 = vmatprep.subr.mxu0 0.0
      %1479 = vmatpush1.msra.mxu0 0.0
      %1480 = vmatprep.subr.mxu0 0.0
      %1481 = vmatpush1.msra.mxu0 0.0
      %1482 = vmatprep.subr.mxu0 0.0
      %1483 = vmatpush1.msra.mxu0 0.0
      %1484 = vmatprep.subr.mxu0 0.0
      %1485 = vmatpush1.msra.mxu0 0.0
      %1486 = vmatprep.subr.mxu0 0.0
      %1487 = vmatpush1.msra.mxu0 0.0
      %1488 = vmatprep.subr.mxu0 0.0
      %1489 = vmatpush1.msra.mxu0 0.0
      %1490 = vmatprep.subr.mxu0 0.0
      %1491 = vmatpush1.msra.mxu0 0.0
      %1492 = vmatprep.subr.mxu0 0.0
      %1493 = vmatpush1.msra.mxu0 0.0
      %1494 = vmatprep.subr.mxu0 0.0
      %1495 = vmatpush1.msra.mxu0 0.0
      %1496 = vmatprep.subr.mxu0 0.0
      %1497 = vmatpush1.msra.mxu0 0.0
      %1498 = vmatprep.subr.mxu0 0.0
      %1499 = vmatpush1.msra.mxu0 0.0
      %1500 = vmatprep.subr.mxu0 0.0
      %1501 = vmatpush1.msra.mxu0 0.0
      %1502 = vmatprep.subr.mxu0 0.0
      %1503 = vmatpush1.msra.mxu0 0.0
      %1504 = vmatprep.subr.mxu0 0.0
      %1505 = vmatpush1.msra.mxu0 0.0
      %1506 = vmatprep.subr.mxu0 0.0
      %1507 = vmatpush1.msra.mxu0 0.0
      %1508 = vmatprep.subr.mxu0 0.0
      %1509 = vmatpush1.msra.mxu0 0.0
      %1510 = vmatprep.mubr.f32.mxu0 0.0
      %1511 = vmatmul.mubr.f32.gmra.mrb[0].mxu0 %v1399
      %v1512 = vpop.f32.mrb[0].mxu0
      %v1513 = vadd.f32 %v1396, %v1512
      %v1514 = vpop.f32.mrb[0].mxu0
      %1515 = vmatprep.mubr.f32.mxu0 0.0
      %1516 = vmatmul.mubr.f32.gmra.mrb[0].mxu0 %v1402
      %v1517 = vpop.f32.mrb[0].mxu0
      %v1518 = vadd.f32 %v1396, %v1517
      %v1519 = vpop.f32.mrb[0].mxu0
      %1520 = vmatprep.mubr.f32.mxu0 0.0
      %1521 = vmatmul.mubr.f32.gmra.mrb[0].mxu0 %v1405
      %v1522 = vpop.f32.mrb[0].mxu0
      %v1523 = vadd.f32 %v1396, %v1522
      %v1524 = vpop.f32.mrb[0].mxu0
      %1525 = vmatprep.mubr.f32.mxu0 0.0
      %1526 = vmatmul.mubr.f32.gmra.mrb[0].mxu0 %v1408
      %v1527 = vpop.f32.mrb[0].mxu0
      %v1528 = vadd.f32 %v1396, %v1527
      %v1529 = vpop.f32.mrb[0].mxu0
      %1530 = vmatprep.mubr.f32.mxu0 0.0
      %1531 = vmatmul.mubr.f32.gmra.mrb[0].mxu0 %v1411
      %v1532 = vpop.f32.mrb[0].mxu0
      %v1533 = vadd.f32 %v1396, %v1532
      %v1534 = vpop.f32.mrb[0].mxu0
      %1535 = vmatprep.mubr.f32.mxu0 0.0
      %1536 = vmatmul.mubr.f32.gmra.mrb[0].mxu0 %v1414
      %v1537 = vpop.f32.mrb[0].mxu0
      %v1538 = vadd.f32 %v1396, %v1537
      %v1539 = vpop.f32.mrb[0].mxu0
      %1540 = vmatprep.mubr.f32.mxu0 0.0
      %1541 = vmatmul.mubr.f32.gmra.mrb[0].mxu0 %v1417
      %v1542 = vpop.f32.mrb[0].mxu0
      %v1543 = vadd.f32 %v1396, %v1542
      %v1544 = vpop.f32.mrb[0].mxu0
      %1545 = vmatprep.mubr.f32.mxu0 0.0
      %1546 = vmatmul.mubr.f32.gmra.mrb[0].mxu0 %v1420
      %v1547 = vpop.f32.mrb[0].mxu0
      %v1548 = vadd.f32 %v1396, %v1547
      %v1549 = vpop.f32.mrb[0].mxu0
      %1550 = vmatprep.mubr.f32.mxu0 0.0
      %1551 = vmatmul.mubr.f32.gmra.mrb[0].mxu0 %v1423
      %v1552 = vpop.f32.mrb[0].mxu0
      %v1553 = vadd.f32 %v1396, %v1552
      %v1554 = vpop.f32.mrb[0].mxu0
      %1555 = vmatprep.mubr.f32.mxu0 0.0
      %1556 = vmatmul.mubr.f32.gmra.mrb[0].mxu0 %v1426
      %v1557 = vpop.f32.mrb[0].mxu0
      %v1558 = vadd.f32 %v1396, %v1557
      %v1559 = vpop.f32.mrb[0].mxu0
      %1560 = vmatprep.mubr.f32.mxu0 0.0
      %1561 = vmatmul.mubr.f32.gmra.mrb[0].mxu0 %v1429
      %v1562 = vpop.f32.mrb[0].mxu0
      %v1563 = vadd.f32 %v1396, %v1562
      %v1564 = vpop.f32.mrb[0].mxu0
      %1565 = vmatprep.mubr.f32.mxu0 0.0
      %1566 = vmatmul.mubr.f32.gmra.mrb[0].mxu0 %v1432
      %v1567 = vpop.f32.mrb[0].mxu0
      %v1568 = vadd.f32 %v1396, %v1567
      %v1569 = vpop.f32.mrb[0].mxu0
      %1570 = vmatprep.mubr.f32.mxu0 0.0
      %1571 = vmatmul.mubr.f32.gmra.mrb[0].mxu0 %v1435
      %v1572 = vpop.f32.mrb[0].mxu0
      %v1573 = vadd.f32 %v1396, %v1572
      %v1574 = vpop.f32.mrb[0].mxu0
      %1575 = vmatprep.mubr.f32.mxu0 0.0
      %1576 = vmatmul.mubr.f32.gmra.mrb[0].mxu0 %v1438
      %v1577 = vpop.f32.mrb[0].mxu0
      %v1578 = vadd.f32 %v1396, %v1577
      %v1579 = vpop.f32.mrb[0].mxu0
      %1580 = vmatprep.mubr.f32.mxu0 0.0
      %1581 = vmatmul.mubr.f32.gmra.mrb[0].mxu0 %v1441
      %v1582 = vpop.f32.mrb[0].mxu0
      %v1583 = vadd.f32 %v1396, %v1582
      %v1584 = vpop.f32.mrb[0].mxu0
      %1585 = vmatprep.mubr.f32.mxu0 0.0
      %1586 = vmatmul.mubr.f32.gmra.mrb[0].mxu0 %v1444
      %v1587 = vpop.f32.mrb[0].mxu0
      %v1588 = vadd.f32 %v1396, %v1587
      %v1589 = vpop.f32.mrb[0].mxu0
      %1590 = vdwg.mxu0
      %v1591 = vmax.f32 %v1513, 0.0
      %v1592 = vmax.f32 %v1518, 0.0
      %v1593 = vmax.f32 %v1523, 0.0
      %v1594 = vmax.f32 %v1528, 0.0
      %v1595 = vmax.f32 %v1533, 0.0
      %v1596 = vmax.f32 %v1538, 0.0
      %v1597 = vmax.f32 %v1543, 0.0
      %v1598 = vmax.f32 %v1548, 0.0
      %v1599 = vmax.f32 %v1553, 0.0
      %v1600 = vmax.f32 %v1558, 0.0
      %v1601 = vmax.f32 %v1563, 0.0
      %v1602 = vmax.f32 %v1568, 0.0
      %v1603 = vmax.f32 %v1573, 0.0
      %v1604 = vmax.f32 %v1578, 0.0
      %v1605 = vmax.f32 %v1583, 0.0
      %v1606 = vmax.f32 %v1588, 0.0
      %v1607 = vld [vmem:[%s7] sm:$0xff]
      %v1608 = vld [vmem:[%s7 + $0x8] sm:$0xff]
      %v1609 = vld [vmem:[%s7 + $0x10] sm:$0xff]
      %v1610 = vld [vmem:[%s7 + $0x18] sm:$0xff]
      %v1611 = vld [vmem:[%s8] sm:$0x1]
      %v1613 = vlaneseq
      %v1614 = vshrl.u32 %v1613, 7
      %v1615 = vsub.s32 0, %v1614
      %v1616 = vrot.slane %v1611, %v1615
      %v1619 = vsel %vm1177, %v1591, 0
      %v1622 = vsel %vm1177, %v1592, 0
      %v1625 = vsel %vm1177, %v1593, 0
      %v1628 = vsel %vm1177, %v1594, 0
      %v1631 = vsel %vm1177, %v1595, 0
      %v1634 = vsel %vm1177, %v1596, 0
      %v1637 = vsel %vm1177, %v1597, 0
      %v1640 = vsel %vm1177, %v1598, 0
      %v1643 = vsel %vm1177, %v1599, 0
      %v1646 = vsel %vm1177, %v1600, 0
      %v1649 = vsel %vm1177, %v1601, 0
      %v1652 = vsel %vm1177, %v1602, 0
      %v1655 = vsel %vm1177, %v1603, 0
      %v1658 = vsel %vm1177, %v1604, 0
      %v1661 = vsel %vm1177, %v1605, 0
      %v1664 = vsel %vm1177, %v1606, 0
      %1666 = vmatprep.subr.mxu0 0.0
      %1667 = vmatpush1.msra.mxu0 %v1607
      %1668 = vmatprep.subr.mxu0 0.0
      %1669 = vmatpush1.msra.mxu0 %v1608
      %1670 = vmatprep.subr.mxu0 0.0
      %1671 = vmatpush1.msra.mxu0 %v1609
      %1672 = vmatprep.subr.mxu0 0.0
      %1673 = vmatpush1.msra.mxu0 %v1610
      %1674 = vmatprep.subr.mxu0 0.0
      %1675 = vmatpush1.msra.mxu0 0.0
      %1676 = vmatprep.subr.mxu0 0.0
      %1677 = vmatpush1.msra.mxu0 0.0
      %1678 = vmatprep.subr.mxu0 0.0
      %1679 = vmatpush1.msra.mxu0 0.0
      %1680 = vmatprep.subr.mxu0 0.0
      %1681 = vmatpush1.msra.mxu0 0.0
      %1682 = vmatprep.subr.mxu0 0.0
      %1683 = vmatpush1.msra.mxu0 0.0
      %1684 = vmatprep.subr.mxu0 0.0
      %1685 = vmatpush1.msra.mxu0 0.0
      %1686 = vmatprep.subr.mxu0 0.0
      %1687 = vmatpush1.msra.mxu0 0.0
      %1688 = vmatprep.subr.mxu0 0.0
      %1689 = vmatpush1.msra.mxu0 0.0
      %1690 = vmatprep.subr.mxu0 0.0
      %1691 = vmatpush1.msra.mxu0 0.0
      %1692 = vmatprep.subr.mxu0 0.0
      %1693 = vmatpush1.msra.mxu0 0.0
      %1694 = vmatprep.subr.mxu0 0.0
      %1695 = vmatpush1.msra.mxu0 0.0
      %1696 = vmatprep.subr.mxu0 0.0
      %1697 = vmatpush1.msra.mxu0 0.0
      %1698 = vmatprep.subr.mxu0 0.0
      %1699 = vmatpush1.msra.mxu0 0.0
      %1700 = vmatprep.subr.mxu0 0.0
      %1701 = vmatpush1.msra.mxu0 0.0
      %1702 = vmatprep.subr.mxu0 0.0
      %1703 = vmatpush1.msra.mxu0 0.0
      %1704 = vmatprep.subr.mxu0 0.0
      %1705 = vmatpush1.msra.mxu0 0.0
      %1706 = vmatprep.subr.mxu0 0.0
      %1707 = vmatpush1.msra.mxu0 0.0
      %1708 = vmatprep.subr.mxu0 0.0
      %1709 = vmatpush1.msra.mxu0 0.0
      %1710 = vmatprep.subr.mxu0 0.0
      %1711 = vmatpush1.msra.mxu0 0.0
      %1712 = vmatprep.subr.mxu0 0.0
      %1713 = vmatpush1.msra.mxu0 0.0
      %1714 = vmatprep.subr.mxu0 0.0
      %1715 = vmatpush1.msra.mxu0 0.0
      %1716 = vmatprep.subr.mxu0 0.0
      %1717 = vmatpush1.msra.mxu0 0.0
      %1718 = vmatprep.subr.mxu0 0.0
      %1719 = vmatpush1.msra.mxu0 0.0
      %1720 = vmatprep.subr.mxu0 0.0
      %1721 = vmatpush1.msra.mxu0 0.0
      %1722 = vmatprep.subr.mxu0 0.0
      %1723 = vmatpush1.msra.mxu0 0.0
      %1724 = vmatprep.subr.mxu0 0.0
      %1725 = vmatpush1.msra.mxu0 0.0
      %1726 = vmatprep.subr.mxu0 0.0
      %1727 = vmatpush1.msra.mxu0 0.0
      %1728 = vmatprep.subr.mxu0 0.0
      %1729 = vmatpush1.msra.mxu0 0.0
      %1730 = vmatprep.mubr.f32.mxu0 0.0
      %1731 = vmatmul.mubr.f32.gmra.mrb[0].mxu0 %v1619
      %v1732 = vpop.f32.mrb[0].mxu0
      %v1733 = vadd.f32 %v1616, %v1732
      %v1734 = vpop.f32.mrb[0].mxu0
      %1735 = vmatprep.mubr.f32.mxu0 0.0
      %1736 = vmatmul.mubr.f32.gmra.mrb[0].mxu0 %v1622
      %v1737 = vpop.f32.mrb[0].mxu0
      %v1738 = vadd.f32 %v1616, %v1737
      %v1739 = vpop.f32.mrb[0].mxu0
      %1740 = vmatprep.mubr.f32.mxu0 0.0
      %1741 = vmatmul.mubr.f32.gmra.mrb[0].mxu0 %v1625
      %v1742 = vpop.f32.mrb[0].mxu0
      %v1743 = vadd.f32 %v1616, %v1742
      %v1744 = vpop.f32.mrb[0].mxu0
      %1745 = vmatprep.mubr.f32.mxu0 0.0
      %1746 = vmatmul.mubr.f32.gmra.mrb[0].mxu0 %v1628
      %v1747 = vpop.f32.mrb[0].mxu0
      %v1748 = vadd.f32 %v1616, %v1747
      %v1749 = vpop.f32.mrb[0].mxu0
      %1750 = vmatprep.mubr.f32.mxu0 0.0
      %1751 = vmatmul.mubr.f32.gmra.mrb[0].mxu0 %v1631
      %v1752 = vpop.f32.mrb[0].mxu0
      %v1753 = vadd.f32 %v1616, %v1752
      %v1754 = vpop.f32.mrb[0].mxu0
      %1755 = vmatprep.mubr.f32.mxu0 0.0
      %1756 = vmatmul.mubr.f32.gmra.mrb[0].mxu0 %v1634
      %v1757 = vpop.f32.mrb[0].mxu0
      %v1758 = vadd.f32 %v1616, %v1757
      %v1759 = vpop.f32.mrb[0].mxu0
      %1760 = vmatprep.mubr.f32.mxu0 0.0
      %1761 = vmatmul.mubr.f32.gmra.mrb[0].mxu0 %v1637
      %v1762 = vpop.f32.mrb[0].mxu0
      %v1763 = vadd.f32 %v1616, %v1762
      %v1764 = vpop.f32.mrb[0].mxu0
      %1765 = vmatprep.mubr.f32.mxu0 0.0
      %1766 = vmatmul.mubr.f32.gmra.mrb[0].mxu0 %v1640
      %v1767 = vpop.f32.mrb[0].mxu0
      %v1768 = vadd.f32 %v1616, %v1767
      %v1769 = vpop.f32.mrb[0].mxu0
      %1770 = vmatprep.mubr.f32.mxu0 0.0
      %1771 = vmatmul.mubr.f32.gmra.mrb[0].mxu0 %v1643
      %v1772 = vpop.f32.mrb[0].mxu0
      %v1773 = vadd.f32 %v1616, %v1772
      %v1774 = vpop.f32.mrb[0].mxu0
      %1775 = vmatprep.mubr.f32.mxu0 0.0
      %1776 = vmatmul.mubr.f32.gmra.mrb[0].mxu0 %v1646
      %v1777 = vpop.f32.mrb[0].mxu0
      %v1778 = vadd.f32 %v1616, %v1777
      %v1779 = vpop.f32.mrb[0].mxu0
      %1780 = vmatprep.mubr.f32.mxu0 0.0
      %1781 = vmatmul.mubr.f32.gmra.mrb[0].mxu0 %v1649
      %v1782 = vpop.f32.mrb[0].mxu0
      %v1783 = vadd.f32 %v1616, %v1782
      %v1784 = vpop.f32.mrb[0].mxu0
      %1785 = vmatprep.mubr.f32.mxu0 0.0
      %1786 = vmatmul.mubr.f32.gmra.mrb[0].mxu0 %v1652
      %v1787 = vpop.f32.mrb[0].mxu0
      %v1788 = vadd.f32 %v1616, %v1787
      %v1789 = vpop.f32.mrb[0].mxu0
      %1790 = vmatprep.mubr.f32.mxu0 0.0
      %1791 = vmatmul.mubr.f32.gmra.mrb[0].mxu0 %v1655
      %v1792 = vpop.f32.mrb[0].mxu0
      %v1793 = vadd.f32 %v1616, %v1792
      %v1794 = vpop.f32.mrb[0].mxu0
      %1795 = vmatprep.mubr.f32.mxu0 0.0
      %1796 = vmatmul.mubr.f32.gmra.mrb[0].mxu0 %v1658
      %v1797 = vpop.f32.mrb[0].mxu0
      %v1798 = vadd.f32 %v1616, %v1797
      %v1799 = vpop.f32.mrb[0].mxu0
      %1800 = vmatprep.mubr.f32.mxu0 0.0
      %1801 = vmatmul.mubr.f32.gmra.mrb[0].mxu0 %v1661
      %v1802 = vpop.f32.mrb[0].mxu0
      %v1803 = vadd.f32 %v1616, %v1802
      %v1804 = vpop.f32.mrb[0].mxu0
      %1805 = vmatprep.mubr.f32.mxu0 0.0
      %1806 = vmatmul.mubr.f32.gmra.mrb[0].mxu0 %v1664
      %v1807 = vpop.f32.mrb[0].mxu0
      %v1808 = vadd.f32 %v1616, %v1807
      %v1809 = vpop.f32.mrb[0].mxu0
      %1810 = vdwg.mxu0
      %vm1811 = vcmask 31744
      %1812 = vst.msk [vmem:[%s337] sm:$0xff] %vm1811, %v1733
      %1813 = vst.msk [vmem:[%s337 + $0x8] sm:$0xff] %vm1811, %v1738
      %1814 = vst.msk [vmem:[%s337 + $0x10] sm:$0xff] %vm1811, %v1743
      %1815 = vst.msk [vmem:[%s337 + $0x18] sm:$0xff] %vm1811, %v1748
      %1816 = vst.msk [vmem:[%s337 + $0x20] sm:$0xff] %vm1811, %v1753
      %1817 = vst.msk [vmem:[%s337 + $0x28] sm:$0xff] %vm1811, %v1758
      %1818 = vst.msk [vmem:[%s337 + $0x30] sm:$0xff] %vm1811, %v1763
      %1819 = vst.msk [vmem:[%s337 + $0x38] sm:$0xff] %vm1811, %v1768
      %1820 = vst.msk [vmem:[%s337 + $0x40] sm:$0xff] %vm1811, %v1773
      %1821 = vst.msk [vmem:[%s337 + $0x48] sm:$0xff] %vm1811, %v1778
      %1822 = vst.msk [vmem:[%s337 + $0x50] sm:$0xff] %vm1811, %v1783
      %1823 = vst.msk [vmem:[%s337 + $0x58] sm:$0xff] %vm1811, %v1788
      %1824 = vst.msk [vmem:[%s337 + $0x60] sm:$0xff] %vm1811, %v1793
      %1825 = vst.msk [vmem:[%s337 + $0x68] sm:$0xff] %vm1811, %v1798
      %1826 = vst.msk [vmem:[%s337 + $0x70] sm:$0xff] %vm1811, %v1803
      %1827 = vst.msk [vmem:[%s337 + $0x78] sm:$0xff] %vm1811, %v1808
      %s1828 = smul.u32 16, %s20
      %p1829 = scmp.lt.s32.totalorder %s1828, 31
      %s1830 = scalar_select %p1829, %s1828, 31
      %s1831 = smul.addr %s1830, 8
      %s1832 = scalar_lea.vmem %s9, %s1831
      // Predicated region
      $region57: #{_encoder_forward_impl.1} parent=55 // pred_check
        %p1833 = pneg %p232
      $region58: #{_encoder_forward_impl.1} parent=55 // pred_check_branch
        %1835 = sbr.rel (%p1833) target = $region60
      $region59: #{_encoder_forward_impl.1} parent=55 // pred_region
        %s1836 = smul.u32 16, %s20
      $region60: #{_encoder_forward_impl.1} parent=55 // pred_fallthru
        _
    $region56: #{_encoder_forward_impl.1} parent=5 // pred_fallthru
      _
    %p1837 = scmp.le.s32.totalorder 2, %s15
    // Predicated region
    $region61: #{_encoder_forward_impl.1} parent=5 // pred_check
      %p1838 = pneg %p1837
    $region62: #{_encoder_forward_impl.1} parent=5 // pred_check_branch
      %1840 = sbr.rel (%p1838) target = $region64
    $region63: #{_encoder_forward_impl.1} parent=5 // pred_region
      %s1841 = ssub.s32 %s15, 2
      // Predicated region
      $region65: #{_encoder_forward_impl.1} parent=63 // pred_check
        %p1842 = pneg %p238
      $region66: #{_encoder_forward_impl.1} parent=63 // pred_check_branch
        %1844 = sbr.rel (%p1842) target = $region68
      $region67: #{_encoder_forward_impl.1} parent=63 // pred_region
        %s1845 = smul.u32 16, %s21
        %p1846 = scmp.lt.s32.totalorder %s1845, 31
        %s1847 = scalar_select %p1846, %s1845, 31
        %s1848 = smul.addr %s1847, 8
        %s1849 = scalar_lea.vmem %s9, %s1848
      $region68: #{_encoder_forward_impl.1} parent=63 // pred_fallthru
        _
    $region64: #{_encoder_forward_impl.1} parent=5 // pred_fallthru
      _
  $region6: #{_encoder_forward_impl.1} parent=0 // loop_footer
    %s19 = sadd.s32 1, %s15
  $region7: #{_encoder_forward_impl.1} parent=0 // loop_footer_branch
    %14 = sbr.rel target = $region3
  $region8: #{_encoder_forward_impl.1} parent=0 // loop_exit
    _

</llo_original>
